<compile_context>
chip_gen: v7x
topology: tpu7x:2x2x1
jax: 0.10.0
libtpu: 0.0.40
codegen_flags: <defaults>
</compile_context>

<pallas_src>
import math

import jax
import jax.numpy as jnp
from jax.experimental import pallas as pl
from jax.experimental.pallas import tpu as pltpu


def _round_up(x, m):
    return ((x + m - 1) // m) * m


# ----------------------------------------------------------------------------
# Pallas kernel: whole FeatMapToLatent forward for a tile of batch rows.
#   x  : (bm, H*W*C)   f32, NCHW-flattened input (cast to bf16 in-kernel)
#   w_l: (K_l, N_l)    bf16 dense layer matrices (conv+BN folded / merged head)
#   b_l: (1, N_l)      f32 biases
# All intermediates stay on-chip; only the (bm, 128) lane-dense result is stored.
# ----------------------------------------------------------------------------
def _mish(y, dtype=jnp.float32):
    # mish(y) = y * tanh(softplus(y)) = y * ((1+e^y)^2 - 1) / ((1+e^y)^2 + 1)
    # -> one EUP exp + one approx EUP reciprocal instead of exp + log1p + tanh.
    # `dtype` is f32 on v5e/older (no bf16 VPU/EUP), bf16 on v6e/v7x.
    y = y.astype(dtype)
    t = jnp.exp(jnp.minimum(y, 20.0))          # clamp: for y >= 20, mish(y) == y
    u = (1.0 + t) * (1.0 + t)
    num = y * (u - 1.0)
    inv = pl.reciprocal((u + 1.0).astype(jnp.float32), approx=True)
    return num * inv.astype(dtype)


def _make_fused_kernel(n_layers, mish_dtype):
    def kernel(*refs):
        x_ref, o_ref = refs[0], refs[-1]
        wb_refs = refs[1:-1]
        h = x_ref[...].astype(jnp.bfloat16)                      # cast in-kernel (no XLA pass)
        for l in range(n_layers):
            w_ref, b_ref = wb_refs[2 * l], wb_refs[2 * l + 1]
            y = jnp.dot(h, w_ref[...],
                        preferred_element_type=jnp.float32) + b_ref[...]
            if l < n_layers - 1:
                h = _mish(y, mish_dtype).astype(jnp.bfloat16)    # bf16 for next MXU matmul
            else:
                o_ref[...] = y.astype(o_ref.dtype)               # linear head: no activation
    return kernel


def _default_mish_dtype():
    """bf16 epilogue on chips with bf16 VPU/EUP (v6e/v7x); f32 otherwise."""
    try:
        kind = jax.devices()[0].device_kind.lower()
    except Exception:  # pragma: no cover - be conservative
        return jnp.float32
    for tag in ("v2", "v3", "v4", "v5"):
        if tag in kind:
            return jnp.float32
    return jnp.bfloat16


def _pick_bm(B):
    """Batch-row tile: big enough to amortize per-step overhead, >=2 tiles for v7x."""
    if B <= 8:
        return B                               # tiny batch: one full-dim tile
    return max(8, min(512, _round_up(pl.cdiv(B, 2), 8)))


def fused_forward(x_flat, weights, biases, *, mish_dtype=None):
    """x_flat: (B, K0) NCHW-flat; weights: list of (K_l, N_l) bf16; biases: (1, N_l) f32."""
    B, K0 = x_flat.shape
    n_layers = len(weights)
    n_out = weights[-1].shape[1]
    if mish_dtype is None:
        mish_dtype = _default_mish_dtype()

    bm = _pick_bm(B)
    grid = (pl.cdiv(B, bm),)

    const = lambda i: (0, 0)                   # weights/biases stay resident across the grid
    in_specs = [pl.BlockSpec((bm, K0), lambda i: (i, 0))]
    operands = [x_flat]
    for w, b in zip(weights, biases):
        in_specs.append(pl.BlockSpec(w.shape, const))
        in_specs.append(pl.BlockSpec(b.shape, const))
        operands.append(w)
        operands.append(b)

    # advisory cost estimate so XLA schedules neighbors around this small kernel
    flops_row = 2 * sum(int(w.shape[0]) * int(w.shape[1]) for w in weights)
    trans_row = 2 * sum(int(w.shape[1]) for w in weights[:-1])     # exp + reciprocal
    param_bytes = sum(int(w.size) * w.dtype.itemsize for w in weights) + \
                  sum(int(b.size) * b.dtype.itemsize for b in biases)
    cost = pl.CostEstimate(
        flops=flops_row * B,
        transcendentals=trans_row * B,
        bytes_accessed=int(x_flat.size) * x_flat.dtype.itemsize
                       + B * n_out * 4 + param_bytes)

    return pl.pallas_call(
        _make_fused_kernel(n_layers, mish_dtype),
        out_shape=jax.ShapeDtypeStruct((B, n_out), jnp.float32),
        grid=grid,
        in_specs=in_specs,
        out_specs=pl.BlockSpec((bm, n_out), lambda i: (i, 0)),
        compiler_params=pltpu.CompilerParams(
            dimension_semantics=("parallel",),          # shard batch tiles across TCs (v7x)
            vmem_limit_bytes=32 * 1024 * 1024),
        cost_estimate=cost,
    )(*operands)


# ----------------------------------------------------------------------------
# Wrapper-side, one-time parameter preprocessing (plain JAX, not the hot path)
# ----------------------------------------------------------------------------
def im2col_s2_k3_p1(x):
    """NHWC 3x3 / stride-2 / pad-1 im2col: (B,H,W,C) -> (B*Ho*Wo, 9*C), (kh,kw,c) order."""
    B, H, W, C = x.shape
    Ho, Wo = H // 2, W // 2
    xp = jnp.pad(x, ((0, 0), (1, 1), (1, 1), (0, 0)))
    cols = []
    for kh in range(3):
        for kw in range(3):
            cols.append(xp[:, kh:kh + 2 * Ho:2, kw:kw + 2 * Wo:2, :])
    patches = jnp.stack(cols, axis=3)                       # (B, Ho, Wo, 9, C)
    return patches.reshape(B * Ho * Wo, 9 * C), (B, Ho, Wo)


def conv3x3_s2_dense(w_hwio, H, W, input_layout="nhwc"):
    """Dense (H*W*Cin, Ho*Wo*Cout) matrix of the 3x3/s2/p1 conv on flat input vectors.

    input_layout="nchw": rows are indexed in NCHW-flat order (so the kernel can
    consume a raw x_nchw.reshape(B, -1) with no wrapper-side transpose pass).
    Output flattening is always NHWC (h, w, c_out) with c fastest.
    """
    Ci, Co = w_hwio.shape[2], w_hwio.shape[3]
    Ho, Wo = H // 2, W // 2
    n = H * W * Ci
    eye = jnp.eye(n, dtype=jnp.float32)
    if input_layout == "nchw":
        basis = eye.reshape(n, Ci, H, W).transpose(0, 2, 3, 1)     # NCHW rows -> NHWC images
    else:
        basis = eye.reshape(n, H, W, Ci)
    cols, _ = im2col_s2_k3_p1(basis)                               # (n * Ho*Wo, 9*Ci)
    out = cols @ w_hwio.reshape(9 * Ci, Co)                        # conv on basis images
    return out.reshape(n, Ho * Wo * Co)


def prepare_fused_params(params, input_imsize, smallest_imsize, eps=1e-5, pad_out_to=128):
    """Fold BN into convs, lower each conv to a dense flat matmul (layer 0 takes
    NCHW-flat input), merge the final full-spatial conv with the linear head, and
    zero-pad the head output to a lane-dense width (128)."""
    size = input_imsize
    weights, biases = [], []
    for li, blk in enumerate(params["blocks"]):
        scale = blk["gamma"] / jnp.sqrt(blk["var"] + eps)           # BN (eval) folding
        w_f = blk["w"] * scale[None, None, None, :]
        b_f = (blk["b"] - blk["mean"]) * scale + blk["beta"]
        layout = "nchw" if li == 0 else "nhwc"
        w_d = conv3x3_s2_dense(w_f, size, size, input_layout=layout)
        size //= 2
        b_d = jnp.tile(b_f, size * size)                            # flat (h,w,c), c fastest
        weights.append(w_d.astype(jnp.bfloat16))
        biases.append(b_d[None, :].astype(jnp.float32))
    assert size == smallest_imsize

    # final conv (kernel = smallest_imsize, full spatial) merged with the linear head
    z = params["z_dims"]
    lin_w_eff = (params["lin_w"] * params["lin_gain"]).T            # (z_in, z_out)
    if len(params["blocks"]) == 0:
        # no downsampling blocks: head consumes the raw NCHW-flat input
        wf2d = jnp.transpose(params["final_w"], (2, 0, 1, 3)).reshape(-1, z)
    else:
        wf2d = params["final_w"].reshape(-1, z)                     # rows = (h, w, c_in)
    w3 = wf2d @ lin_w_eff
    b3 = params["final_b"] @ lin_w_eff + params["lin_b"]

    n_out = max(pad_out_to, _round_up(z, 128))                      # lane-dense output store
    w3p = jnp.zeros((w3.shape[0], n_out), w3.dtype).at[:, :z].set(w3)
    b3p = jnp.zeros((n_out,), b3.dtype).at[:z].set(b3)
    weights.append(w3p.astype(jnp.bfloat16))
    biases.append(b3p[None, :].astype(jnp.float32))
    return dict(weights=weights, biases=biases, z_dims=z)


def feat_map_to_latent(fused, x_nchw):
    B = x_nchw.shape[0]
    x_flat = x_nchw.reshape(B, -1)       # NCHW-flat: no transpose / no cast HBM pass
    out = fused_forward(x_flat, fused["weights"], fused["biases"])
    return out[:, :fused["z_dims"]]      # strip lane padding (128 -> z_dims)


# ----------------------------------------------------------------------------
# Deterministic synthetic parameters (no checkpoint) + pure-JAX reference
# ----------------------------------------------------------------------------
def init_params(key, input_imsize, smallest_imsize, nc_in, z_dims):
    n_down = int(round(math.log2(input_imsize) - math.log2(smallest_imsize)))
    keys = jax.random.split(key, 2 * n_down + 3)
    k = iter(keys)

    blocks = []
    nc = nc_in
    for _ in range(n_down):
        next_nc = min(z_dims, nc * 2)
        w = jax.random.normal(next(k), (3, 3, nc, next_nc), jnp.float32) / math.sqrt(9 * nc)
        b = 0.1 * jax.random.normal(next(k), (next_nc,), jnp.float32)
        blocks.append(dict(
            w=w, b=b,
            gamma=jnp.ones((next_nc,), jnp.float32),   # eval-mode BN, default stats
            beta=jnp.zeros((next_nc,), jnp.float32),
            mean=jnp.zeros((next_nc,), jnp.float32),
            var=jnp.ones((next_nc,), jnp.float32)))
        nc = next_nc

    s = smallest_imsize
    final_w = jax.random.normal(next(k), (s, s, nc, z_dims), jnp.float32) / math.sqrt(s * s * nc)
    final_b = 0.1 * jax.random.normal(next(k), (z_dims,), jnp.float32)

    # StyleGAN FullyConnectedLayer(z, z, 'linear', lr_multiplier=1):
    #   out = x @ (W * 1/sqrt(in)).T + b, W ~ N(0,1), b = 0
    lin_w = jax.random.normal(next(k), (z_dims, z_dims), jnp.float32)
    lin_b = jnp.zeros((z_dims,), jnp.float32)
    lin_gain = 1.0 / math.sqrt(z_dims)

    return dict(blocks=blocks, final_w=final_w, final_b=final_b,
                lin_w=lin_w, lin_b=lin_b, lin_gain=lin_gain, z_dims=z_dims)


def _mish_ref(y):
    sp = jnp.maximum(y, 0.0) + jnp.log1p(jnp.exp(-jnp.abs(y)))
    return y * jnp.tanh(sp)


def reference_forward(params, x_nchw, eps=1e-5):
    x = jnp.transpose(x_nchw, (0, 2, 3, 1)).astype(jnp.float32)
    for blk in params["blocks"]:
        cols, (B, Ho, Wo) = im2col_s2_k3_p1(x)
        y = cols @ blk["w"].reshape(-1, blk["w"].shape[-1]) + blk["b"]
        scale = blk["gamma"] / jnp.sqrt(blk["var"] + eps)
        y = (y - blk["mean"]) * scale + blk["beta"]
        x = _mish_ref(y).reshape(B, Ho, Wo, -1)
    B, z = x.shape[0], params["z_dims"]
    y = x.reshape(B, -1) @ params["final_w"].reshape(-1, z) + params["final_b"]
    return y @ (params["lin_w"] * params["lin_gain"]).T + params["lin_b"]


if __name__ == "__main__":
    input_imsize, smallest_imsize, nc_in, z_dims = 16, 4, 4, 32
    batch = 2

    key = jax.random.PRNGKey(0)
    k_param, k_data = jax.random.split(key)
    params = init_params(k_param, input_imsize, smallest_imsize, nc_in, z_dims)
    fused = prepare_fused_params(params, input_imsize, smallest_imsize)

    x = jax.random.normal(k_data, (batch, nc_in, input_imsize, input_imsize), jnp.float32)

    out = jax.block_until_ready(feat_map_to_latent(fused, x))
    assert out.shape == (batch, z_dims), out.shape
    assert bool(jnp.all(jnp.isfinite(out)))

    # semantics check against a pure-JAX f32 reference (bf16 matmuls, bf16/f32
    # Mish epilogue and the approx reciprocal account for the tolerance)
    ref = reference_forward(params, x)
    assert bool(jnp.allclose(out, ref, rtol=5e-2, atol=5e-2)), (
        float(jnp.max(jnp.abs(out - ref))))

    print("KERNEL_OK")
</pallas_src>

<mosaic_0001>
module attributes {stable_mosaic.version = 11 : i64} {
  func.func @kernel(%arg0: i32, %arg1: memref<2x1024xf32, #tpu.memory_space<vmem>>, %arg2: memref<1024x512xbf16, #tpu.memory_space<vmem>>, %arg3: memref<1x512xf32, #tpu.memory_space<vmem>>, %arg4: memref<512x256xbf16, #tpu.memory_space<vmem>>, %arg5: memref<1x256xf32, #tpu.memory_space<vmem>>, %arg6: memref<256x128xbf16, #tpu.memory_space<vmem>>, %arg7: memref<1x128xf32, #tpu.memory_space<vmem>>, %arg8: memref<2x128xf32, #tpu.memory_space<vmem>>) attributes {dimension_semantics = [#tpu.dimension_semantics<parallel>], iteration_bounds = array<i64: 1>, scalar_prefetch = 0 : i64, scratch_operands = 0 : i64, tpu.core_type = #tpu.core_type<tc>, window_params = [{transform_indices = @transform_0, window_bounds = array<i64: 2, 1024>}, {pipeline_mode = #tpu.pipeline_mode<synchronous>, transform_indices = @transform_1, window_bounds = array<i64: 1024, 512>}, {pipeline_mode = #tpu.pipeline_mode<synchronous>, transform_indices = @transform_2, window_bounds = array<i64: 1, 512>}, {pipeline_mode = #tpu.pipeline_mode<synchronous>, transform_indices = @transform_3, window_bounds = array<i64: 512, 256>}, {pipeline_mode = #tpu.pipeline_mode<synchronous>, transform_indices = @transform_4, window_bounds = array<i64: 1, 256>}, {pipeline_mode = #tpu.pipeline_mode<synchronous>, transform_indices = @transform_5, window_bounds = array<i64: 256, 128>}, {pipeline_mode = #tpu.pipeline_mode<synchronous>, transform_indices = @transform_6, window_bounds = array<i64: 1, 128>}, {transform_indices = @transform_7, window_bounds = array<i64: 2, 128>}]} {
    %c0 = arith.constant 0 : index
    %c0_0 = arith.constant 0 : index
    %0 = vector.load %arg1[%c0, %c0_0] : memref<2x1024xf32, #tpu.memory_space<vmem>>, vector<2x1024xf32>
    %1 = arith.truncf %0 : vector<2x1024xf32> to vector<2x1024xbf16>
    %c0_1 = arith.constant 0 : index
    %c0_2 = arith.constant 0 : index
    %2 = vector.load %arg2[%c0_1, %c0_2] : memref<1024x512xbf16, #tpu.memory_space<vmem>>, vector<1024x512xbf16>
    %cst = arith.constant dense<0.000000e+00> : vector<2x512xf32>
    %3 = tpu.matmul %1, %2, %cst {dimension_numbers = #tpu.dot_dimension_numbers<[1], [0], [0], [1], [0, 0, 1, 1], [], []>} : vector<2x1024xbf16>, vector<1024x512xbf16>, vector<2x512xf32> -> vector<2x512xf32>
    %c0_3 = arith.constant 0 : index
    %c0_4 = arith.constant 0 : index
    %4 = vector.load %arg3[%c0_3, %c0_4] : memref<1x512xf32, #tpu.memory_space<vmem>>, vector<1x512xf32>
    %5 = vector.broadcast %4 : vector<1x512xf32> to vector<2x512xf32>
    %6 = arith.addf %3, %5 : vector<2x512xf32>
    %7 = arith.truncf %6 : vector<2x512xf32> to vector<2x512xbf16>
    %cst_5 = arith.constant 2.000000e+01 : bf16
    %8 = vector.broadcast %cst_5 : bf16 to vector<2x512xbf16>
    %9 = arith.minimumf %7, %8 : vector<2x512xbf16>
    %10 = math.exp %9 : vector<2x512xbf16>
    %cst_6 = arith.constant 1.000000e+00 : bf16
    %11 = vector.broadcast %cst_6 : bf16 to vector<2x512xbf16>
    %12 = arith.addf %11, %10 : vector<2x512xbf16>
    %cst_7 = arith.constant 1.000000e+00 : bf16
    %13 = vector.broadcast %cst_7 : bf16 to vector<2x512xbf16>
    %14 = arith.addf %13, %10 : vector<2x512xbf16>
    %15 = arith.mulf %12, %14 : vector<2x512xbf16>
    %cst_8 = arith.constant 1.000000e+00 : bf16
    %16 = vector.broadcast %cst_8 : bf16 to vector<2x512xbf16>
    %17 = arith.subf %15, %16 : vector<2x512xbf16>
    %18 = arith.mulf %7, %17 : vector<2x512xbf16>
    %cst_9 = arith.constant 1.000000e+00 : bf16
    %19 = vector.broadcast %cst_9 : bf16 to vector<2x512xbf16>
    %20 = arith.addf %15, %19 : vector<2x512xbf16>
    %21 = arith.extf %20 : vector<2x512xbf16> to vector<2x512xf32>
    %22 = tpu.reciprocal %21 {approx = true} : vector<2x512xf32> -> vector<2x512xf32>
    %23 = arith.truncf %22 : vector<2x512xf32> to vector<2x512xbf16>
    %24 = arith.mulf %18, %23 : vector<2x512xbf16>
    %c0_10 = arith.constant 0 : index
    %c0_11 = arith.constant 0 : index
    %25 = vector.load %arg4[%c0_10, %c0_11] : memref<512x256xbf16, #tpu.memory_space<vmem>>, vector<512x256xbf16>
    %cst_12 = arith.constant dense<0.000000e+00> : vector<2x256xf32>
    %26 = tpu.matmul %24, %25, %cst_12 {dimension_numbers = #tpu.dot_dimension_numbers<[1], [0], [0], [1], [0, 0, 1, 1], [], []>} : vector<2x512xbf16>, vector<512x256xbf16>, vector<2x256xf32> -> vector<2x256xf32>
    %c0_13 = arith.constant 0 : index
    %c0_14 = arith.constant 0 : index
    %27 = vector.load %arg5[%c0_13, %c0_14] : memref<1x256xf32, #tpu.memory_space<vmem>>, vector<1x256xf32>
    %28 = vector.broadcast %27 : vector<1x256xf32> to vector<2x256xf32>
    %29 = arith.addf %26, %28 : vector<2x256xf32>
    %30 = arith.truncf %29 : vector<2x256xf32> to vector<2x256xbf16>
    %cst_15 = arith.constant 2.000000e+01 : bf16
    %31 = vector.broadcast %cst_15 : bf16 to vector<2x256xbf16>
    %32 = arith.minimumf %30, %31 : vector<2x256xbf16>
    %33 = math.exp %32 : vector<2x256xbf16>
    %cst_16 = arith.constant 1.000000e+00 : bf16
    %34 = vector.broadcast %cst_16 : bf16 to vector<2x256xbf16>
    %35 = arith.addf %34, %33 : vector<2x256xbf16>
    %cst_17 = arith.constant 1.000000e+00 : bf16
    %36 = vector.broadcast %cst_17 : bf16 to vector<2x256xbf16>
    %37 = arith.addf %36, %33 : vector<2x256xbf16>
    %38 = arith.mulf %35, %37 : vector<2x256xbf16>
    %cst_18 = arith.constant 1.000000e+00 : bf16
    %39 = vector.broadcast %cst_18 : bf16 to vector<2x256xbf16>
    %40 = arith.subf %38, %39 : vector<2x256xbf16>
    %41 = arith.mulf %30, %40 : vector<2x256xbf16>
    %cst_19 = arith.constant 1.000000e+00 : bf16
    %42 = vector.broadcast %cst_19 : bf16 to vector<2x256xbf16>
    %43 = arith.addf %38, %42 : vector<2x256xbf16>
    %44 = arith.extf %43 : vector<2x256xbf16> to vector<2x256xf32>
    %45 = tpu.reciprocal %44 {approx = true} : vector<2x256xf32> -> vector<2x256xf32>
    %46 = arith.truncf %45 : vector<2x256xf32> to vector<2x256xbf16>
    %47 = arith.mulf %41, %46 : vector<2x256xbf16>
    %c0_20 = arith.constant 0 : index
    %c0_21 = arith.constant 0 : index
    %48 = vector.load %arg6[%c0_20, %c0_21] : memref<256x128xbf16, #tpu.memory_space<vmem>>, vector<256x128xbf16>
    %cst_22 = arith.constant dense<0.000000e+00> : vector<2x128xf32>
    %49 = tpu.matmul %47, %48, %cst_22 {dimension_numbers = #tpu.dot_dimension_numbers<[1], [0], [0], [1], [0, 0, 1, 1], [], []>} : vector<2x256xbf16>, vector<256x128xbf16>, vector<2x128xf32> -> vector<2x128xf32>
    %c0_23 = arith.constant 0 : index
    %c0_24 = arith.constant 0 : index
    %50 = vector.load %arg7[%c0_23, %c0_24] : memref<1x128xf32, #tpu.memory_space<vmem>>, vector<1x128xf32>
    %51 = vector.broadcast %50 : vector<1x128xf32> to vector<2x128xf32>
    %52 = arith.addf %49, %51 : vector<2x128xf32>
    %c0_25 = arith.constant 0 : index
    %c0_26 = arith.constant 0 : index
    %53 = vector.load %arg8[%c0_25, %c0_26] : memref<2x128xf32, #tpu.memory_space<vmem>>, vector<2x128xf32>
    tpu.vector_store %arg8[%c0_25, %c0_26], %52 {strides = array<i32>} : memref<2x128xf32, #tpu.memory_space<vmem>>, vector<2x128xf32>,
    return
  }
  func.func @transform_0(%arg0: i32) -> (i32, i32) {
    %c0_i32 = arith.constant 0 : i32
    %c0_i32_0 = arith.constant 0 : i32
    return %arg0, %c0_i32 : i32, i32
  }
  func.func @transform_1(%arg0: i32) -> (i32, i32) {
    %c0_i32 = arith.constant 0 : i32
    %c0_i32_0 = arith.constant 0 : i32
    %c0_i32_1 = arith.constant 0 : i32
    return %c0_i32, %c0_i32_0 : i32, i32
  }
  func.func @transform_2(%arg0: i32) -> (i32, i32) {
    %c0_i32 = arith.constant 0 : i32
    %c0_i32_0 = arith.constant 0 : i32
    %c0_i32_1 = arith.constant 0 : i32
    return %c0_i32, %c0_i32_0 : i32, i32
  }
  func.func @transform_3(%arg0: i32) -> (i32, i32) {
    %c0_i32 = arith.constant 0 : i32
    %c0_i32_0 = arith.constant 0 : i32
    %c0_i32_1 = arith.constant 0 : i32
    return %c0_i32, %c0_i32_0 : i32, i32
  }
  func.func @transform_4(%arg0: i32) -> (i32, i32) {
    %c0_i32 = arith.constant 0 : i32
    %c0_i32_0 = arith.constant 0 : i32
    %c0_i32_1 = arith.constant 0 : i32
    return %c0_i32, %c0_i32_0 : i32, i32
  }
  func.func @transform_5(%arg0: i32) -> (i32, i32) {
    %c0_i32 = arith.constant 0 : i32
    %c0_i32_0 = arith.constant 0 : i32
    %c0_i32_1 = arith.constant 0 : i32
    return %c0_i32, %c0_i32_0 : i32, i32
  }
  func.func @transform_6(%arg0: i32) -> (i32, i32) {
    %c0_i32 = arith.constant 0 : i32
    %c0_i32_0 = arith.constant 0 : i32
    %c0_i32_1 = arith.constant 0 : i32
    return %c0_i32, %c0_i32_0 : i32, i32
  }
  func.func @transform_7(%arg0: i32) -> (i32, i32) {
    %c0_i32 = arith.constant 0 : i32
    %c0_i32_0 = arith.constant 0 : i32
    return %arg0, %c0_i32 : i32, i32
  }
}

</mosaic_0001>

<llo_original>
// kernel: tpu_custom_call.1
$region0: #{tpu_custom_call.1}
  #allocation0 [shape = 'u32[]', space=smem, size = 0x4, offset = 0x4, fixed_abs, tag = 'smem constant byte address 0x4 - core index']
  #allocation1 [shape = 'u32[144,128]{1,0:T(1,128)}', space=vmem, size = 0x12000, scoped, tag = 'internal scratch']
  %s0 = inlined_call_operand.hbm [shape: f32[2,1024], index: 0, kind: input, shape index: {}]
  %s1 = inlined_call_operand.hbm [shape: bf16[1024,512], index: 1, kind: input, shape index: {}]
  %s2 = inlined_call_operand.vmem [shape: f32[1,512], index: 2, kind: input, shape index: {}]
  %s3 = inlined_call_operand.hbm [shape: bf16[512,256], index: 3, kind: input, shape index: {}]
  %s4 = inlined_call_operand.vmem [shape: f32[1,256], index: 4, kind: input, shape index: {}]
  %s5 = inlined_call_operand.hbm [shape: bf16[256,128], index: 5, kind: input, shape index: {}]
  %s6 = inlined_call_operand.vmem [shape: f32[1,128], index: 6, kind: input, shape index: {}]
  %s7 = inlined_call_operand.hbm [shape: f32[2,128], index: 7, kind: output, shape index: {}]
  %s8 = sld [smem:[#allocation0]]
  $region54: #{tpu_custom_call.1} parent=0
    _
  %s10 = ssub.s32 1, %s8
  %s11 = scalar_select 0, %s10, %s8
  $region1: #{tpu_custom_call.1} parent=0
    #allocation2 [shape = 'u8[8192]{0}', space=vmem, size = 0x2000, scoped, tag = 'input window, operand 0, single buffered']
    #allocation3 [shape = 's32[1]{0}', space=sflag, size = 0x4, scoped, tag = 'scoped memory for tpu_custom_call.1']
    #allocation4 [shape = 's32[1]{0}', space=sflag, size = 0x4, scoped, tag = 'scoped memory for tpu_custom_call.1']
    #allocation5 [shape = 'u8[1048576]{0}', space=vmem, size = 0x100000, scoped, tag = 'input window, operand 1, single buffered']
    #allocation6 [shape = 's32[1]{0}', space=sflag, size = 0x4, scoped, tag = 'scoped memory for tpu_custom_call.1']
    #allocation7 [shape = 'u8[262144]{0}', space=vmem, size = 0x40000, scoped, tag = 'input window, operand 3, single buffered']
    #allocation8 [shape = 'u8[65536]{0}', space=vmem, size = 0x10000, scoped, tag = 'input window, operand 5, single buffered']
    #allocation9 [shape = 's32[1]{0}', space=sflag, size = 0x4, scoped, tag = 'scoped memory for tpu_custom_call.1']
    #allocation10 [shape = 'u8[1024]{0}', space=vmem, size = 0x400, scoped, tag = 'output window, operand 0, single buffered']
    %12 = vsyncpa [#allocation3], 0
    %13 = vsyncpa [#allocation6], 0
    %14 = vsyncpa [#allocation9], 0
    %15 = vsyncpa [#allocation4], 0
    // Predicated region
    $region2: #{tpu_custom_call.1} parent=1 // pred_check
      _
    $region3: #{tpu_custom_call.1} parent=1 // pred_check_branch
      %17 = sbr.rel (0) target = $region5
    $region4: #{tpu_custom_call.1} parent=1 // pred_region
      %s19 = ssub.s32 256, 256
      %20 = vsyncadd [#allocation3], %s19
      %s22 = sshll.u32 [#allocation2], 4
      %s23 = int_to_ptr.vmem [resolvable:$true] %s22
      %25 = dma.hbm_to_vmem [thread:$0]  %s0, 256, %s23, [#allocation3]
    $region5: #{tpu_custom_call.1} parent=1 // pred_fallthru
      _
    // Predicated region
    $region6: #{tpu_custom_call.1} parent=1 // pred_check
      _
    $region7: #{tpu_custom_call.1} parent=1 // pred_check_branch
      %27 = sbr.rel (0) target = $region9
    $region8: #{tpu_custom_call.1} parent=1 // pred_region
      %s29 = ssub.s32 32768, 32768
      %30 = vsyncadd [#allocation6], %s29
      %s31 = sshll.u32 [#allocation5], 4
      %s32 = int_to_ptr.vmem [resolvable:$true] %s31
      %37 = dma.hbm_to_vmem [thread:$0]  %s1, 32768, %s32, [#allocation6], 256, 256, 16
    $region9: #{tpu_custom_call.1} parent=1 // pred_fallthru
      _
    // Predicated region
    $region10: #{tpu_custom_call.1} parent=1 // pred_check
      _
    $region11: #{tpu_custom_call.1} parent=1 // pred_check_branch
      %39 = sbr.rel (0) target = $region13
    $region12: #{tpu_custom_call.1} parent=1 // pred_region
      _
    $region13: #{tpu_custom_call.1} parent=1 // pred_fallthru
      _
    // Predicated region
    $region14: #{tpu_custom_call.1} parent=1 // pred_check
      _
    $region15: #{tpu_custom_call.1} parent=1 // pred_check_branch
      %41 = sbr.rel (0) target = $region17
    $region16: #{tpu_custom_call.1} parent=1 // pred_region
      %s43 = ssub.s32 8192, 8192
      %44 = vsyncadd [#allocation6], %s43
      %s45 = sshll.u32 [#allocation7], 4
      %s46 = int_to_ptr.vmem [resolvable:$true] %s45
      %51 = dma.hbm_to_vmem [thread:$0]  %s3, 8192, %s46, [#allocation6], 128, 128, 8
    $region17: #{tpu_custom_call.1} parent=1 // pred_fallthru
      _
    // Predicated region
    $region18: #{tpu_custom_call.1} parent=1 // pred_check
      _
    $region19: #{tpu_custom_call.1} parent=1 // pred_check_branch
      %53 = sbr.rel (0) target = $region21
    $region20: #{tpu_custom_call.1} parent=1 // pred_region
      _
    $region21: #{tpu_custom_call.1} parent=1 // pred_fallthru
      _
    // Predicated region
    $region22: #{tpu_custom_call.1} parent=1 // pred_check
      _
    $region23: #{tpu_custom_call.1} parent=1 // pred_check_branch
      %55 = sbr.rel (0) target = $region25
    $region24: #{tpu_custom_call.1} parent=1 // pred_region
      %s57 = ssub.s32 2048, 2048
      %58 = vsyncadd [#allocation9], %s57
      %s59 = sshll.u32 [#allocation8], 4
      %s60 = int_to_ptr.vmem [resolvable:$true] %s59
      %65 = dma.hbm_to_vmem [thread:$0]  %s5, 2048, %s60, [#allocation9], 64, 64, 4
    $region25: #{tpu_custom_call.1} parent=1 // pred_fallthru
      _
    // Predicated region
    $region26: #{tpu_custom_call.1} parent=1 // pred_check
      _
    $region27: #{tpu_custom_call.1} parent=1 // pred_check_branch
      %67 = sbr.rel (0) target = $region29
    $region28: #{tpu_custom_call.1} parent=1 // pred_region
      _
    $region29: #{tpu_custom_call.1} parent=1 // pred_fallthru
      _
    // Predicated region
    $region30: #{tpu_custom_call.1} parent=1 // pred_check
      _
    $region31: #{tpu_custom_call.1} parent=1 // pred_check_branch
      %69 = sbr.rel (0) target = $region33
    $region32: #{tpu_custom_call.1} parent=1 // pred_region
      %70 = dma.done [#allocation3], 256
    $region33: #{tpu_custom_call.1} parent=1 // pred_fallthru
      _
    // Predicated region
    $region34: #{tpu_custom_call.1} parent=1 // pred_check
      _
    $region35: #{tpu_custom_call.1} parent=1 // pred_check_branch
      %72 = sbr.rel (0) target = $region37
    $region36: #{tpu_custom_call.1} parent=1 // pred_region
      %73 = dma.done [#allocation6], 32768
    $region37: #{tpu_custom_call.1} parent=1 // pred_fallthru
      _
    // Predicated region
    $region38: #{tpu_custom_call.1} parent=1 // pred_check
      _
    $region39: #{tpu_custom_call.1} parent=1 // pred_check_branch
      %75 = sbr.rel (0) target = $region41
    $region40: #{tpu_custom_call.1} parent=1 // pred_region
      %76 = dma.done [#allocation6], 8192
    $region41: #{tpu_custom_call.1} parent=1 // pred_fallthru
      _
    // Predicated region
    $region42: #{tpu_custom_call.1} parent=1 // pred_check
      _
    $region43: #{tpu_custom_call.1} parent=1 // pred_check_branch
      %78 = sbr.rel (0) target = $region45
    $region44: #{tpu_custom_call.1} parent=1 // pred_region
      %79 = dma.done [#allocation9], 2048
    $region45: #{tpu_custom_call.1} parent=1 // pred_fallthru
      _
    %v83 = vld [vmem:[#allocation2] sm:$0xff]
    %v84 = vld [vmem:[#allocation2 + $0x8] sm:$0xff]
    %v87 = vcombine.high %v83, %v83
    %v89 = vunpack.c.l.s4 1983009808
    %v90 = vunpack.c.0.s8 %v89
    %v91 = vlaneseq
    %v92 = vshrl.u32 %v91, 7
    %v93 = vsub.s32 %v90, %v92
    %v94 = vrot.slane %v83, %v93
    %v96 = vunpack.c.l.s4 1983009808
    %v97 = vunpack.c.0.s8 %v96
    %v98 = vlaneseq
    %v99 = vshrl.u32 %v98, 7
    %v100 = vsub.s32 %v97, %v99
    %v101 = vrot.slane %v87, %v100
    %v102 = vcombine.high %v94, %v94
    %v103 = vcombine.high %v101, %v101
    %v104 = vcombine.high %v84, %v84
    %v106 = vunpack.c.l.s4 1983009808
    %v107 = vunpack.c.0.s8 %v106
    %v108 = vlaneseq
    %v109 = vshrl.u32 %v108, 7
    %v110 = vsub.s32 %v107, %v109
    %v111 = vrot.slane %v84, %v110
    %v113 = vunpack.c.l.s4 1983009808
    %v114 = vunpack.c.0.s8 %v113
    %v115 = vlaneseq
    %v116 = vshrl.u32 %v115, 7
    %v117 = vsub.s32 %v114, %v116
    %v118 = vrot.slane %v104, %v117
    %v119 = vcombine.high %v111, %v111
    %v120 = vcombine.high %v118, %v118
    %v129 = vpack.c.bf16 %v94, %v94
    %v130 = vpack.c.bf16 %v102, %v102
    %v131 = vpack.c.bf16 %v101, %v101
    %v132 = vpack.c.bf16 %v103, %v103
    %v133 = vpack.c.bf16 %v111, %v111
    %v134 = vpack.c.bf16 %v119, %v119
    %v135 = vpack.c.bf16 %v118, %v118
    %v136 = vpack.c.bf16 %v120, %v120
    %v137 = vld [vmem:[#allocation5] sm:$0xff]
    %v138 = vld [vmem:[#allocation5 + $0x8] sm:$0xff]
    %v139 = vld [vmem:[#allocation5 + $0x10] sm:$0xff]
    %v140 = vld [vmem:[#allocation5 + $0x18] sm:$0xff]
    %v141 = vld [vmem:[#allocation5 + $0x20] sm:$0xff]
    %v142 = vld [vmem:[#allocation5 + $0x28] sm:$0xff]
    %v143 = vld [vmem:[#allocation5 + $0x30] sm:$0xff]
    %v144 = vld [vmem:[#allocation5 + $0x38] sm:$0xff]
    %v145 = vld [vmem:[#allocation5 + $0x40] sm:$0xff]
    %v146 = vld [vmem:[#allocation5 + $0x48] sm:$0xff]
    %v147 = vld [vmem:[#allocation5 + $0x50] sm:$0xff]
    %v148 = vld [vmem:[#allocation5 + $0x58] sm:$0xff]
    %v149 = vld [vmem:[#allocation5 + $0x60] sm:$0xff]
    %v150 = vld [vmem:[#allocation5 + $0x68] sm:$0xff]
    %v151 = vld [vmem:[#allocation5 + $0x70] sm:$0xff]
    %v152 = vld [vmem:[#allocation5 + $0x78] sm:$0xff]
    %v153 = vld [vmem:[#allocation5 + $0x80] sm:$0xff]
    %v154 = vld [vmem:[#allocation5 + $0x88] sm:$0xff]
    %v155 = vld [vmem:[#allocation5 + $0x90] sm:$0xff]
    %v156 = vld [vmem:[#allocation5 + $0x98] sm:$0xff]
    %v157 = vld [vmem:[#allocation5 + $0xa0] sm:$0xff]
    %v158 = vld [vmem:[#allocation5 + $0xa8] sm:$0xff]
    %v159 = vld [vmem:[#allocation5 + $0xb0] sm:$0xff]
    %v160 = vld [vmem:[#allocation5 + $0xb8] sm:$0xff]
    %v161 = vld [vmem:[#allocation5 + $0xc0] sm:$0xff]
    %v162 = vld [vmem:[#allocation5 + $0xc8] sm:$0xff]
    %v163 = vld [vmem:[#allocation5 + $0xd0] sm:$0xff]
    %v164 = vld [vmem:[#allocation5 + $0xd8] sm:$0xff]
    %v165 = vld [vmem:[#allocation5 + $0xe0] sm:$0xff]
    %v166 = vld [vmem:[#allocation5 + $0xe8] sm:$0xff]
    %v167 = vld [vmem:[#allocation5 + $0xf0] sm:$0xff]
    %v168 = vld [vmem:[#allocation5 + $0xf8] sm:$0xff]
    %v169 = vld [vmem:[#allocation5 + $0x100] sm:$0xff]
    %v170 = vld [vmem:[#allocation5 + $0x108] sm:$0xff]
    %v171 = vld [vmem:[#allocation5 + $0x110] sm:$0xff]
    %v172 = vld [vmem:[#allocation5 + $0x118] sm:$0xff]
    %v173 = vld [vmem:[#allocation5 + $0x120] sm:$0xff]
    %v174 = vld [vmem:[#allocation5 + $0x128] sm:$0xff]
    %v175 = vld [vmem:[#allocation5 + $0x130] sm:$0xff]
    %v176 = vld [vmem:[#allocation5 + $0x138] sm:$0xff]
    %v177 = vld [vmem:[#allocation5 + $0x140] sm:$0xff]
    %v178 = vld [vmem:[#allocation5 + $0x148] sm:$0xff]
    %v179 = vld [vmem:[#allocation5 + $0x150] sm:$0xff]
    %v180 = vld [vmem:[#allocation5 + $0x158] sm:$0xff]
    %v181 = vld [vmem:[#allocation5 + $0x160] sm:$0xff]
    %v182 = vld [vmem:[#allocation5 + $0x168] sm:$0xff]
    %v183 = vld [vmem:[#allocation5 + $0x170] sm:$0xff]
    %v184 = vld [vmem:[#allocation5 + $0x178] sm:$0xff]
    %v185 = vld [vmem:[#allocation5 + $0x180] sm:$0xff]
    %v186 = vld [vmem:[#allocation5 + $0x188] sm:$0xff]
    %v187 = vld [vmem:[#allocation5 + $0x190] sm:$0xff]
    %v188 = vld [vmem:[#allocation5 + $0x198] sm:$0xff]
    %v189 = vld [vmem:[#allocation5 + $0x1a0] sm:$0xff]
    %v190 = vld [vmem:[#allocation5 + $0x1a8] sm:$0xff]
    %v191 = vld [vmem:[#allocation5 + $0x1b0] sm:$0xff]
    %v192 = vld [vmem:[#allocation5 + $0x1b8] sm:$0xff]
    %v193 = vld [vmem:[#allocation5 + $0x1c0] sm:$0xff]
    %v194 = vld [vmem:[#allocation5 + $0x1c8] sm:$0xff]
    %v195 = vld [vmem:[#allocation5 + $0x1d0] sm:$0xff]
    %v196 = vld [vmem:[#allocation5 + $0x1d8] sm:$0xff]
    %v197 = vld [vmem:[#allocation5 + $0x1e0] sm:$0xff]
    %v198 = vld [vmem:[#allocation5 + $0x1e8] sm:$0xff]
    %v199 = vld [vmem:[#allocation5 + $0x1f0] sm:$0xff]
    %v200 = vld [vmem:[#allocation5 + $0x1f8] sm:$0xff]
    %v201 = vld [vmem:[#allocation5 + $0x200] sm:$0xff]
    %v202 = vld [vmem:[#allocation5 + $0x208] sm:$0xff]
    %v203 = vld [vmem:[#allocation5 + $0x210] sm:$0xff]
    %v204 = vld [vmem:[#allocation5 + $0x218] sm:$0xff]
    %v205 = vld [vmem:[#allocation5 + $0x220] sm:$0xff]
    %v206 = vld [vmem:[#allocation5 + $0x228] sm:$0xff]
    %v207 = vld [vmem:[#allocation5 + $0x230] sm:$0xff]
    %v208 = vld [vmem:[#allocation5 + $0x238] sm:$0xff]
    %v209 = vld [vmem:[#allocation5 + $0x240] sm:$0xff]
    %v210 = vld [vmem:[#allocation5 + $0x248] sm:$0xff]
    %v211 = vld [vmem:[#allocation5 + $0x250] sm:$0xff]
    %v212 = vld [vmem:[#allocation5 + $0x258] sm:$0xff]
    %v213 = vld [vmem:[#allocation5 + $0x260] sm:$0xff]
    %v214 = vld [vmem:[#allocation5 + $0x268] sm:$0xff]
    %v215 = vld [vmem:[#allocation5 + $0x270] sm:$0xff]
    %v216 = vld [vmem:[#allocation5 + $0x278] sm:$0xff]
    %v217 = vld [vmem:[#allocation5 + $0x280] sm:$0xff]
    %v218 = vld [vmem:[#allocation5 + $0x288] sm:$0xff]
    %v219 = vld [vmem:[#allocation5 + $0x290] sm:$0xff]
    %v220 = vld [vmem:[#allocation5 + $0x298] sm:$0xff]
    %v221 = vld [vmem:[#allocation5 + $0x2a0] sm:$0xff]
    %v222 = vld [vmem:[#allocation5 + $0x2a8] sm:$0xff]
    %v223 = vld [vmem:[#allocation5 + $0x2b0] sm:$0xff]
    %v224 = vld [vmem:[#allocation5 + $0x2b8] sm:$0xff]
    %v225 = vld [vmem:[#allocation5 + $0x2c0] sm:$0xff]
    %v226 = vld [vmem:[#allocation5 + $0x2c8] sm:$0xff]
    %v227 = vld [vmem:[#allocation5 + $0x2d0] sm:$0xff]
    %v228 = vld [vmem:[#allocation5 + $0x2d8] sm:$0xff]
    %v229 = vld [vmem:[#allocation5 + $0x2e0] sm:$0xff]
    %v230 = vld [vmem:[#allocation5 + $0x2e8] sm:$0xff]
    %v231 = vld [vmem:[#allocation5 + $0x2f0] sm:$0xff]
    %v232 = vld [vmem:[#allocation5 + $0x2f8] sm:$0xff]
    %v233 = vld [vmem:[#allocation5 + $0x300] sm:$0xff]
    %v234 = vld [vmem:[#allocation5 + $0x308] sm:$0xff]
    %v235 = vld [vmem:[#allocation5 + $0x310] sm:$0xff]
    %v236 = vld [vmem:[#allocation5 + $0x318] sm:$0xff]
    %v237 = vld [vmem:[#allocation5 + $0x320] sm:$0xff]
    %v238 = vld [vmem:[#allocation5 + $0x328] sm:$0xff]
    %v239 = vld [vmem:[#allocation5 + $0x330] sm:$0xff]
    %v240 = vld [vmem:[#allocation5 + $0x338] sm:$0xff]
    %v241 = vld [vmem:[#allocation5 + $0x340] sm:$0xff]
    %v242 = vld [vmem:[#allocation5 + $0x348] sm:$0xff]
    %v243 = vld [vmem:[#allocation5 + $0x350] sm:$0xff]
    %v244 = vld [vmem:[#allocation5 + $0x358] sm:$0xff]
    %v245 = vld [vmem:[#allocation5 + $0x360] sm:$0xff]
    %v246 = vld [vmem:[#allocation5 + $0x368] sm:$0xff]
    %v247 = vld [vmem:[#allocation5 + $0x370] sm:$0xff]
    %v248 = vld [vmem:[#allocation5 + $0x378] sm:$0xff]
    %v249 = vld [vmem:[#allocation5 + $0x380] sm:$0xff]
    %v250 = vld [vmem:[#allocation5 + $0x388] sm:$0xff]
    %v251 = vld [vmem:[#allocation5 + $0x390] sm:$0xff]
    %v252 = vld [vmem:[#allocation5 + $0x398] sm:$0xff]
    %v253 = vld [vmem:[#allocation5 + $0x3a0] sm:$0xff]
    %v254 = vld [vmem:[#allocation5 + $0x3a8] sm:$0xff]
    %v255 = vld [vmem:[#allocation5 + $0x3b0] sm:$0xff]
    %v256 = vld [vmem:[#allocation5 + $0x3b8] sm:$0xff]
    %v257 = vld [vmem:[#allocation5 + $0x3c0] sm:$0xff]
    %v258 = vld [vmem:[#allocation5 + $0x3c8] sm:$0xff]
    %v259 = vld [vmem:[#allocation5 + $0x3d0] sm:$0xff]
    %v260 = vld [vmem:[#allocation5 + $0x3d8] sm:$0xff]
    %v261 = vld [vmem:[#allocation5 + $0x3e0] sm:$0xff]
    %v262 = vld [vmem:[#allocation5 + $0x3e8] sm:$0xff]
    %v263 = vld [vmem:[#allocation5 + $0x3f0] sm:$0xff]
    %v264 = vld [vmem:[#allocation5 + $0x3f8] sm:$0xff]
    %v265 = vld [vmem:[#allocation5 + $0x400] sm:$0xff]
    %v266 = vld [vmem:[#allocation5 + $0x408] sm:$0xff]
    %v267 = vld [vmem:[#allocation5 + $0x410] sm:$0xff]
    %v268 = vld [vmem:[#allocation5 + $0x418] sm:$0xff]
    %v269 = vld [vmem:[#allocation5 + $0x420] sm:$0xff]
    %v270 = vld [vmem:[#allocation5 + $0x428] sm:$0xff]
    %v271 = vld [vmem:[#allocation5 + $0x430] sm:$0xff]
    %v272 = vld [vmem:[#allocation5 + $0x438] sm:$0xff]
    %v273 = vld [vmem:[#allocation5 + $0x440] sm:$0xff]
    %v274 = vld [vmem:[#allocation5 + $0x448] sm:$0xff]
    %v275 = vld [vmem:[#allocation5 + $0x450] sm:$0xff]
    %v276 = vld [vmem:[#allocation5 + $0x458] sm:$0xff]
    %v277 = vld [vmem:[#allocation5 + $0x460] sm:$0xff]
    %v278 = vld [vmem:[#allocation5 + $0x468] sm:$0xff]
    %v279 = vld [vmem:[#allocation5 + $0x470] sm:$0xff]
    %v280 = vld [vmem:[#allocation5 + $0x478] sm:$0xff]
    %v281 = vld [vmem:[#allocation5 + $0x480] sm:$0xff]
    %v282 = vld [vmem:[#allocation5 + $0x488] sm:$0xff]
    %v283 = vld [vmem:[#allocation5 + $0x490] sm:$0xff]
    %v284 = vld [vmem:[#allocation5 + $0x498] sm:$0xff]
    %v285 = vld [vmem:[#allocation5 + $0x4a0] sm:$0xff]
    %v286 = vld [vmem:[#allocation5 + $0x4a8] sm:$0xff]
    %v287 = vld [vmem:[#allocation5 + $0x4b0] sm:$0xff]
    %v288 = vld [vmem:[#allocation5 + $0x4b8] sm:$0xff]
    %v289 = vld [vmem:[#allocation5 + $0x4c0] sm:$0xff]
    %v290 = vld [vmem:[#allocation5 + $0x4c8] sm:$0xff]
    %v291 = vld [vmem:[#allocation5 + $0x4d0] sm:$0xff]
    %v292 = vld [vmem:[#allocation5 + $0x4d8] sm:$0xff]
    %v293 = vld [vmem:[#allocation5 + $0x4e0] sm:$0xff]
    %v294 = vld [vmem:[#allocation5 + $0x4e8] sm:$0xff]
    %v295 = vld [vmem:[#allocation5 + $0x4f0] sm:$0xff]
    %v296 = vld [vmem:[#allocation5 + $0x4f8] sm:$0xff]
    %v297 = vld [vmem:[#allocation5 + $0x500] sm:$0xff]
    %v298 = vld [vmem:[#allocation5 + $0x508] sm:$0xff]
    %v299 = vld [vmem:[#allocation5 + $0x510] sm:$0xff]
    %v300 = vld [vmem:[#allocation5 + $0x518] sm:$0xff]
    %v301 = vld [vmem:[#allocation5 + $0x520] sm:$0xff]
    %v302 = vld [vmem:[#allocation5 + $0x528] sm:$0xff]
    %v303 = vld [vmem:[#allocation5 + $0x530] sm:$0xff]
    %v304 = vld [vmem:[#allocation5 + $0x538] sm:$0xff]
    %v305 = vld [vmem:[#allocation5 + $0x540] sm:$0xff]
    %v306 = vld [vmem:[#allocation5 + $0x548] sm:$0xff]
    %v307 = vld [vmem:[#allocation5 + $0x550] sm:$0xff]
    %v308 = vld [vmem:[#allocation5 + $0x558] sm:$0xff]
    %v309 = vld [vmem:[#allocation5 + $0x560] sm:$0xff]
    %v310 = vld [vmem:[#allocation5 + $0x568] sm:$0xff]
    %v311 = vld [vmem:[#allocation5 + $0x570] sm:$0xff]
    %v312 = vld [vmem:[#allocation5 + $0x578] sm:$0xff]
    %v313 = vld [vmem:[#allocation5 + $0x580] sm:$0xff]
    %v314 = vld [vmem:[#allocation5 + $0x588] sm:$0xff]
    %v315 = vld [vmem:[#allocation5 + $0x590] sm:$0xff]
    %v316 = vld [vmem:[#allocation5 + $0x598] sm:$0xff]
    %v317 = vld [vmem:[#allocation5 + $0x5a0] sm:$0xff]
    %v318 = vld [vmem:[#allocation5 + $0x5a8] sm:$0xff]
    %v319 = vld [vmem:[#allocation5 + $0x5b0] sm:$0xff]
    %v320 = vld [vmem:[#allocation5 + $0x5b8] sm:$0xff]
    %v321 = vld [vmem:[#allocation5 + $0x5c0] sm:$0xff]
    %v322 = vld [vmem:[#allocation5 + $0x5c8] sm:$0xff]
    %v323 = vld [vmem:[#allocation5 + $0x5d0] sm:$0xff]
    %v324 = vld [vmem:[#allocation5 + $0x5d8] sm:$0xff]
    %v325 = vld [vmem:[#allocation5 + $0x5e0] sm:$0xff]
    %v326 = vld [vmem:[#allocation5 + $0x5e8] sm:$0xff]
    %v327 = vld [vmem:[#allocation5 + $0x5f0] sm:$0xff]
    %v328 = vld [vmem:[#allocation5 + $0x5f8] sm:$0xff]
    %v329 = vld [vmem:[#allocation5 + $0x600] sm:$0xff]
    %v330 = vld [vmem:[#allocation5 + $0x608] sm:$0xff]
    %v331 = vld [vmem:[#allocation5 + $0x610] sm:$0xff]
    %v332 = vld [vmem:[#allocation5 + $0x618] sm:$0xff]
    %v333 = vld [vmem:[#allocation5 + $0x620] sm:$0xff]
    %v334 = vld [vmem:[#allocation5 + $0x628] sm:$0xff]
    %v335 = vld [vmem:[#allocation5 + $0x630] sm:$0xff]
    %v336 = vld [vmem:[#allocation5 + $0x638] sm:$0xff]
    %v337 = vld [vmem:[#allocation5 + $0x640] sm:$0xff]
    %v338 = vld [vmem:[#allocation5 + $0x648] sm:$0xff]
    %v339 = vld [vmem:[#allocation5 + $0x650] sm:$0xff]
    %v340 = vld [vmem:[#allocation5 + $0x658] sm:$0xff]
    %v341 = vld [vmem:[#allocation5 + $0x660] sm:$0xff]
    %v342 = vld [vmem:[#allocation5 + $0x668] sm:$0xff]
    %v343 = vld [vmem:[#allocation5 + $0x670] sm:$0xff]
    %v344 = vld [vmem:[#allocation5 + $0x678] sm:$0xff]
    %v345 = vld [vmem:[#allocation5 + $0x680] sm:$0xff]
    %v346 = vld [vmem:[#allocation5 + $0x688] sm:$0xff]
    %v347 = vld [vmem:[#allocation5 + $0x690] sm:$0xff]
    %v348 = vld [vmem:[#allocation5 + $0x698] sm:$0xff]
    %v349 = vld [vmem:[#allocation5 + $0x6a0] sm:$0xff]
    %v350 = vld [vmem:[#allocation5 + $0x6a8] sm:$0xff]
    %v351 = vld [vmem:[#allocation5 + $0x6b0] sm:$0xff]
    %v352 = vld [vmem:[#allocation5 + $0x6b8] sm:$0xff]
    %v353 = vld [vmem:[#allocation5 + $0x6c0] sm:$0xff]
    %v354 = vld [vmem:[#allocation5 + $0x6c8] sm:$0xff]
    %v355 = vld [vmem:[#allocation5 + $0x6d0] sm:$0xff]
    %v356 = vld [vmem:[#allocation5 + $0x6d8] sm:$0xff]
    %v357 = vld [vmem:[#allocation5 + $0x6e0] sm:$0xff]
    %v358 = vld [vmem:[#allocation5 + $0x6e8] sm:$0xff]
    %v359 = vld [vmem:[#allocation5 + $0x6f0] sm:$0xff]
    %v360 = vld [vmem:[#allocation5 + $0x6f8] sm:$0xff]
    %v361 = vld [vmem:[#allocation5 + $0x700] sm:$0xff]
    %v362 = vld [vmem:[#allocation5 + $0x708] sm:$0xff]
    %v363 = vld [vmem:[#allocation5 + $0x710] sm:$0xff]
    %v364 = vld [vmem:[#allocation5 + $0x718] sm:$0xff]
    %v365 = vld [vmem:[#allocation5 + $0x720] sm:$0xff]
    %v366 = vld [vmem:[#allocation5 + $0x728] sm:$0xff]
    %v367 = vld [vmem:[#allocation5 + $0x730] sm:$0xff]
    %v368 = vld [vmem:[#allocation5 + $0x738] sm:$0xff]
    %v369 = vld [vmem:[#allocation5 + $0x740] sm:$0xff]
    %v370 = vld [vmem:[#allocation5 + $0x748] sm:$0xff]
    %v371 = vld [vmem:[#allocation5 + $0x750] sm:$0xff]
    %v372 = vld [vmem:[#allocation5 + $0x758] sm:$0xff]
    %v373 = vld [vmem:[#allocation5 + $0x760] sm:$0xff]
    %v374 = vld [vmem:[#allocation5 + $0x768] sm:$0xff]
    %v375 = vld [vmem:[#allocation5 + $0x770] sm:$0xff]
    %v376 = vld [vmem:[#allocation5 + $0x778] sm:$0xff]
    %v377 = vld [vmem:[#allocation5 + $0x780] sm:$0xff]
    %v378 = vld [vmem:[#allocation5 + $0x788] sm:$0xff]
    %v379 = vld [vmem:[#allocation5 + $0x790] sm:$0xff]
    %v380 = vld [vmem:[#allocation5 + $0x798] sm:$0xff]
    %v381 = vld [vmem:[#allocation5 + $0x7a0] sm:$0xff]
    %v382 = vld [vmem:[#allocation5 + $0x7a8] sm:$0xff]
    %v383 = vld [vmem:[#allocation5 + $0x7b0] sm:$0xff]
    %v384 = vld [vmem:[#allocation5 + $0x7b8] sm:$0xff]
    %v385 = vld [vmem:[#allocation5 + $0x7c0] sm:$0xff]
    %v386 = vld [vmem:[#allocation5 + $0x7c8] sm:$0xff]
    %v387 = vld [vmem:[#allocation5 + $0x7d0] sm:$0xff]
    %v388 = vld [vmem:[#allocation5 + $0x7d8] sm:$0xff]
    %v389 = vld [vmem:[#allocation5 + $0x7e0] sm:$0xff]
    %v390 = vld [vmem:[#allocation5 + $0x7e8] sm:$0xff]
    %v391 = vld [vmem:[#allocation5 + $0x7f0] sm:$0xff]
    %v392 = vld [vmem:[#allocation5 + $0x7f8] sm:$0xff]
    %v393 = vld [vmem:[%s2] sm:$0xf]
    %v395 = vlaneseq
    %v396 = vshrl.u32 %v395, 7
    %v397 = vsub.s32 0, %v396
    %v398 = vrot.slane %v393, %v397
    %v399 = vlaneseq
    %v400 = vshrl.u32 %v399, 7
    %v401 = vsub.s32 1, %v400
    %v402 = vrot.slane %v393, %v401
    %v403 = vlaneseq
    %v404 = vshrl.u32 %v403, 7
    %v405 = vsub.s32 2, %v404
    %v406 = vrot.slane %v393, %v405
    %v407 = vlaneseq
    %v408 = vshrl.u32 %v407, 7
    %v409 = vsub.s32 3, %v408
    %v410 = vrot.slane %v393, %v409
    %v671 = vunpack.c.l.b16 %v137
    %v672 = vunpack.c.h.b16 %v137
    %v673 = vunpack.c.l.b16 %v138
    %v674 = vunpack.c.h.b16 %v138
    %v675 = vunpack.c.l.b16 %v139
    %v676 = vunpack.c.h.b16 %v139
    %v677 = vunpack.c.l.b16 %v140
    %v678 = vunpack.c.h.b16 %v140
    %v679 = vunpack.c.l.b16 %v141
    %v680 = vunpack.c.h.b16 %v141
    %v681 = vunpack.c.l.b16 %v142
    %v682 = vunpack.c.h.b16 %v142
    %v683 = vunpack.c.l.b16 %v143
    %v684 = vunpack.c.h.b16 %v143
    %v685 = vunpack.c.l.b16 %v144
    %v686 = vunpack.c.h.b16 %v144
    %v687 = vunpack.c.l.b16 %v145
    %v688 = vunpack.c.h.b16 %v145
    %v689 = vunpack.c.l.b16 %v146
    %v690 = vunpack.c.h.b16 %v146
    %v691 = vunpack.c.l.b16 %v147
    %v692 = vunpack.c.h.b16 %v147
    %v693 = vunpack.c.l.b16 %v148
    %v694 = vunpack.c.h.b16 %v148
    %v695 = vunpack.c.l.b16 %v149
    %v696 = vunpack.c.h.b16 %v149
    %v697 = vunpack.c.l.b16 %v150
    %v698 = vunpack.c.h.b16 %v150
    %v699 = vunpack.c.l.b16 %v151
    %v700 = vunpack.c.h.b16 %v151
    %v701 = vunpack.c.l.b16 %v152
    %v702 = vunpack.c.h.b16 %v152
    %v703 = vunpack.c.l.b16 %v153
    %v704 = vunpack.c.h.b16 %v153
    %v705 = vunpack.c.l.b16 %v154
    %v706 = vunpack.c.h.b16 %v154
    %v707 = vunpack.c.l.b16 %v155
    %v708 = vunpack.c.h.b16 %v155
    %v709 = vunpack.c.l.b16 %v156
    %v710 = vunpack.c.h.b16 %v156
    %v711 = vunpack.c.l.b16 %v157
    %v712 = vunpack.c.h.b16 %v157
    %v713 = vunpack.c.l.b16 %v158
    %v714 = vunpack.c.h.b16 %v158
    %v715 = vunpack.c.l.b16 %v159
    %v716 = vunpack.c.h.b16 %v159
    %v717 = vunpack.c.l.b16 %v160
    %v718 = vunpack.c.h.b16 %v160
    %v719 = vunpack.c.l.b16 %v161
    %v720 = vunpack.c.h.b16 %v161
    %v721 = vunpack.c.l.b16 %v162
    %v722 = vunpack.c.h.b16 %v162
    %v723 = vunpack.c.l.b16 %v163
    %v724 = vunpack.c.h.b16 %v163
    %v725 = vunpack.c.l.b16 %v164
    %v726 = vunpack.c.h.b16 %v164
    %v727 = vunpack.c.l.b16 %v165
    %v728 = vunpack.c.h.b16 %v165
    %v729 = vunpack.c.l.b16 %v166
    %v730 = vunpack.c.h.b16 %v166
    %v731 = vunpack.c.l.b16 %v167
    %v732 = vunpack.c.h.b16 %v167
    %v733 = vunpack.c.l.b16 %v168
    %v734 = vunpack.c.h.b16 %v168
    %v735 = vunpack.c.l.b16 %v169
    %v736 = vunpack.c.h.b16 %v169
    %v737 = vunpack.c.l.b16 %v170
    %v738 = vunpack.c.h.b16 %v170
    %v739 = vunpack.c.l.b16 %v171
    %v740 = vunpack.c.h.b16 %v171
    %v741 = vunpack.c.l.b16 %v172
    %v742 = vunpack.c.h.b16 %v172
    %v743 = vunpack.c.l.b16 %v173
    %v744 = vunpack.c.h.b16 %v173
    %v745 = vunpack.c.l.b16 %v174
    %v746 = vunpack.c.h.b16 %v174
    %v747 = vunpack.c.l.b16 %v175
    %v748 = vunpack.c.h.b16 %v175
    %v749 = vunpack.c.l.b16 %v176
    %v750 = vunpack.c.h.b16 %v176
    %v751 = vunpack.c.l.b16 %v177
    %v752 = vunpack.c.h.b16 %v177
    %v753 = vunpack.c.l.b16 %v178
    %v754 = vunpack.c.h.b16 %v178
    %v755 = vunpack.c.l.b16 %v179
    %v756 = vunpack.c.h.b16 %v179
    %v757 = vunpack.c.l.b16 %v180
    %v758 = vunpack.c.h.b16 %v180
    %v759 = vunpack.c.l.b16 %v181
    %v760 = vunpack.c.h.b16 %v181
    %v761 = vunpack.c.l.b16 %v182
    %v762 = vunpack.c.h.b16 %v182
    %v763 = vunpack.c.l.b16 %v183
    %v764 = vunpack.c.h.b16 %v183
    %v765 = vunpack.c.l.b16 %v184
    %v766 = vunpack.c.h.b16 %v184
    %v767 = vunpack.c.l.b16 %v185
    %v768 = vunpack.c.h.b16 %v185
    %v769 = vunpack.c.l.b16 %v186
    %v770 = vunpack.c.h.b16 %v186
    %v771 = vunpack.c.l.b16 %v187
    %v772 = vunpack.c.h.b16 %v187
    %v773 = vunpack.c.l.b16 %v188
    %v774 = vunpack.c.h.b16 %v188
    %v775 = vunpack.c.l.b16 %v189
    %v776 = vunpack.c.h.b16 %v189
    %v777 = vunpack.c.l.b16 %v190
    %v778 = vunpack.c.h.b16 %v190
    %v779 = vunpack.c.l.b16 %v191
    %v780 = vunpack.c.h.b16 %v191
    %v781 = vunpack.c.l.b16 %v192
    %v782 = vunpack.c.h.b16 %v192
    %v783 = vunpack.c.l.b16 %v193
    %v784 = vunpack.c.h.b16 %v193
    %v785 = vunpack.c.l.b16 %v194
    %v786 = vunpack.c.h.b16 %v194
    %v787 = vunpack.c.l.b16 %v195
    %v788 = vunpack.c.h.b16 %v195
    %v789 = vunpack.c.l.b16 %v196
    %v790 = vunpack.c.h.b16 %v196
    %v791 = vunpack.c.l.b16 %v197
    %v792 = vunpack.c.h.b16 %v197
    %v793 = vunpack.c.l.b16 %v198
    %v794 = vunpack.c.h.b16 %v198
    %v795 = vunpack.c.l.b16 %v199
    %v796 = vunpack.c.h.b16 %v199
    %v797 = vunpack.c.l.b16 %v200
    %v798 = vunpack.c.h.b16 %v200
    %v799 = vunpack.c.l.b16 %v201
    %v800 = vunpack.c.h.b16 %v201
    %v801 = vunpack.c.l.b16 %v202
    %v802 = vunpack.c.h.b16 %v202
    %v803 = vunpack.c.l.b16 %v203
    %v804 = vunpack.c.h.b16 %v203
    %v805 = vunpack.c.l.b16 %v204
    %v806 = vunpack.c.h.b16 %v204
    %v807 = vunpack.c.l.b16 %v205
    %v808 = vunpack.c.h.b16 %v205
    %v809 = vunpack.c.l.b16 %v206
    %v810 = vunpack.c.h.b16 %v206
    %v811 = vunpack.c.l.b16 %v207
    %v812 = vunpack.c.h.b16 %v207
    %v813 = vunpack.c.l.b16 %v208
    %v814 = vunpack.c.h.b16 %v208
    %v815 = vunpack.c.l.b16 %v209
    %v816 = vunpack.c.h.b16 %v209
    %v817 = vunpack.c.l.b16 %v210
    %v818 = vunpack.c.h.b16 %v210
    %v819 = vunpack.c.l.b16 %v211
    %v820 = vunpack.c.h.b16 %v211
    %v821 = vunpack.c.l.b16 %v212
    %v822 = vunpack.c.h.b16 %v212
    %v823 = vunpack.c.l.b16 %v213
    %v824 = vunpack.c.h.b16 %v213
    %v825 = vunpack.c.l.b16 %v214
    %v826 = vunpack.c.h.b16 %v214
    %v827 = vunpack.c.l.b16 %v215
    %v828 = vunpack.c.h.b16 %v215
    %v829 = vunpack.c.l.b16 %v216
    %v830 = vunpack.c.h.b16 %v216
    %v831 = vunpack.c.l.b16 %v217
    %v832 = vunpack.c.h.b16 %v217
    %v833 = vunpack.c.l.b16 %v218
    %v834 = vunpack.c.h.b16 %v218
    %v835 = vunpack.c.l.b16 %v219
    %v836 = vunpack.c.h.b16 %v219
    %v837 = vunpack.c.l.b16 %v220
    %v838 = vunpack.c.h.b16 %v220
    %v839 = vunpack.c.l.b16 %v221
    %v840 = vunpack.c.h.b16 %v221
    %v841 = vunpack.c.l.b16 %v222
    %v842 = vunpack.c.h.b16 %v222
    %v843 = vunpack.c.l.b16 %v223
    %v844 = vunpack.c.h.b16 %v223
    %v845 = vunpack.c.l.b16 %v224
    %v846 = vunpack.c.h.b16 %v224
    %v847 = vunpack.c.l.b16 %v225
    %v848 = vunpack.c.h.b16 %v225
    %v849 = vunpack.c.l.b16 %v226
    %v850 = vunpack.c.h.b16 %v226
    %v851 = vunpack.c.l.b16 %v227
    %v852 = vunpack.c.h.b16 %v227
    %v853 = vunpack.c.l.b16 %v228
    %v854 = vunpack.c.h.b16 %v228
    %v855 = vunpack.c.l.b16 %v229
    %v856 = vunpack.c.h.b16 %v229
    %v857 = vunpack.c.l.b16 %v230
    %v858 = vunpack.c.h.b16 %v230
    %v859 = vunpack.c.l.b16 %v231
    %v860 = vunpack.c.h.b16 %v231
    %v861 = vunpack.c.l.b16 %v232
    %v862 = vunpack.c.h.b16 %v232
    %v863 = vunpack.c.l.b16 %v233
    %v864 = vunpack.c.h.b16 %v233
    %v865 = vunpack.c.l.b16 %v234
    %v866 = vunpack.c.h.b16 %v234
    %v867 = vunpack.c.l.b16 %v235
    %v868 = vunpack.c.h.b16 %v235
    %v869 = vunpack.c.l.b16 %v236
    %v870 = vunpack.c.h.b16 %v236
    %v871 = vunpack.c.l.b16 %v237
    %v872 = vunpack.c.h.b16 %v237
    %v873 = vunpack.c.l.b16 %v238
    %v874 = vunpack.c.h.b16 %v238
    %v875 = vunpack.c.l.b16 %v239
    %v876 = vunpack.c.h.b16 %v239
    %v877 = vunpack.c.l.b16 %v240
    %v878 = vunpack.c.h.b16 %v240
    %v879 = vunpack.c.l.b16 %v241
    %v880 = vunpack.c.h.b16 %v241
    %v881 = vunpack.c.l.b16 %v242
    %v882 = vunpack.c.h.b16 %v242
    %v883 = vunpack.c.l.b16 %v243
    %v884 = vunpack.c.h.b16 %v243
    %v885 = vunpack.c.l.b16 %v244
    %v886 = vunpack.c.h.b16 %v244
    %v887 = vunpack.c.l.b16 %v245
    %v888 = vunpack.c.h.b16 %v245
    %v889 = vunpack.c.l.b16 %v246
    %v890 = vunpack.c.h.b16 %v246
    %v891 = vunpack.c.l.b16 %v247
    %v892 = vunpack.c.h.b16 %v247
    %v893 = vunpack.c.l.b16 %v248
    %v894 = vunpack.c.h.b16 %v248
    %v895 = vunpack.c.l.b16 %v249
    %v896 = vunpack.c.h.b16 %v249
    %v897 = vunpack.c.l.b16 %v250
    %v898 = vunpack.c.h.b16 %v250
    %v899 = vunpack.c.l.b16 %v251
    %v900 = vunpack.c.h.b16 %v251
    %v901 = vunpack.c.l.b16 %v252
    %v902 = vunpack.c.h.b16 %v252
    %v903 = vunpack.c.l.b16 %v253
    %v904 = vunpack.c.h.b16 %v253
    %v905 = vunpack.c.l.b16 %v254
    %v906 = vunpack.c.h.b16 %v254
    %v907 = vunpack.c.l.b16 %v255
    %v908 = vunpack.c.h.b16 %v255
    %v909 = vunpack.c.l.b16 %v256
    %v910 = vunpack.c.h.b16 %v256
    %v911 = vunpack.c.l.b16 %v257
    %v912 = vunpack.c.h.b16 %v257
    %v913 = vunpack.c.l.b16 %v258
    %v914 = vunpack.c.h.b16 %v258
    %v915 = vunpack.c.l.b16 %v259
    %v916 = vunpack.c.h.b16 %v259
    %v917 = vunpack.c.l.b16 %v260
    %v918 = vunpack.c.h.b16 %v260
    %v919 = vunpack.c.l.b16 %v261
    %v920 = vunpack.c.h.b16 %v261
    %v921 = vunpack.c.l.b16 %v262
    %v922 = vunpack.c.h.b16 %v262
    %v923 = vunpack.c.l.b16 %v263
    %v924 = vunpack.c.h.b16 %v263
    %v925 = vunpack.c.l.b16 %v264
    %v926 = vunpack.c.h.b16 %v264
    %v927 = vunpack.c.l.b16 %v265
    %v928 = vunpack.c.h.b16 %v265
    %v929 = vunpack.c.l.b16 %v266
    %v930 = vunpack.c.h.b16 %v266
    %v931 = vunpack.c.l.b16 %v267
    %v932 = vunpack.c.h.b16 %v267
    %v933 = vunpack.c.l.b16 %v268
    %v934 = vunpack.c.h.b16 %v268
    %v935 = vunpack.c.l.b16 %v269
    %v936 = vunpack.c.h.b16 %v269
    %v937 = vunpack.c.l.b16 %v270
    %v938 = vunpack.c.h.b16 %v270
    %v939 = vunpack.c.l.b16 %v271
    %v940 = vunpack.c.h.b16 %v271
    %v941 = vunpack.c.l.b16 %v272
    %v942 = vunpack.c.h.b16 %v272
    %v943 = vunpack.c.l.b16 %v273
    %v944 = vunpack.c.h.b16 %v273
    %v945 = vunpack.c.l.b16 %v274
    %v946 = vunpack.c.h.b16 %v274
    %v947 = vunpack.c.l.b16 %v275
    %v948 = vunpack.c.h.b16 %v275
    %v949 = vunpack.c.l.b16 %v276
    %v950 = vunpack.c.h.b16 %v276
    %v951 = vunpack.c.l.b16 %v277
    %v952 = vunpack.c.h.b16 %v277
    %v953 = vunpack.c.l.b16 %v278
    %v954 = vunpack.c.h.b16 %v278
    %v955 = vunpack.c.l.b16 %v279
    %v956 = vunpack.c.h.b16 %v279
    %v957 = vunpack.c.l.b16 %v280
    %v958 = vunpack.c.h.b16 %v280
    %v959 = vunpack.c.l.b16 %v281
    %v960 = vunpack.c.h.b16 %v281
    %v961 = vunpack.c.l.b16 %v282
    %v962 = vunpack.c.h.b16 %v282
    %v963 = vunpack.c.l.b16 %v283
    %v964 = vunpack.c.h.b16 %v283
    %v965 = vunpack.c.l.b16 %v284
    %v966 = vunpack.c.h.b16 %v284
    %v967 = vunpack.c.l.b16 %v285
    %v968 = vunpack.c.h.b16 %v285
    %v969 = vunpack.c.l.b16 %v286
    %v970 = vunpack.c.h.b16 %v286
    %v971 = vunpack.c.l.b16 %v287
    %v972 = vunpack.c.h.b16 %v287
    %v973 = vunpack.c.l.b16 %v288
    %v974 = vunpack.c.h.b16 %v288
    %v975 = vunpack.c.l.b16 %v289
    %v976 = vunpack.c.h.b16 %v289
    %v977 = vunpack.c.l.b16 %v290
    %v978 = vunpack.c.h.b16 %v290
    %v979 = vunpack.c.l.b16 %v291
    %v980 = vunpack.c.h.b16 %v291
    %v981 = vunpack.c.l.b16 %v292
    %v982 = vunpack.c.h.b16 %v292
    %v983 = vunpack.c.l.b16 %v293
    %v984 = vunpack.c.h.b16 %v293
    %v985 = vunpack.c.l.b16 %v294
    %v986 = vunpack.c.h.b16 %v294
    %v987 = vunpack.c.l.b16 %v295
    %v988 = vunpack.c.h.b16 %v295
    %v989 = vunpack.c.l.b16 %v296
    %v990 = vunpack.c.h.b16 %v296
    %v991 = vunpack.c.l.b16 %v297
    %v992 = vunpack.c.h.b16 %v297
    %v993 = vunpack.c.l.b16 %v298
    %v994 = vunpack.c.h.b16 %v298
    %v995 = vunpack.c.l.b16 %v299
    %v996 = vunpack.c.h.b16 %v299
    %v997 = vunpack.c.l.b16 %v300
    %v998 = vunpack.c.h.b16 %v300
    %v999 = vunpack.c.l.b16 %v301
    %v1000 = vunpack.c.h.b16 %v301
    %v1001 = vunpack.c.l.b16 %v302
    %v1002 = vunpack.c.h.b16 %v302
    %v1003 = vunpack.c.l.b16 %v303
    %v1004 = vunpack.c.h.b16 %v303
    %v1005 = vunpack.c.l.b16 %v304
    %v1006 = vunpack.c.h.b16 %v304
    %v1007 = vunpack.c.l.b16 %v305
    %v1008 = vunpack.c.h.b16 %v305
    %v1009 = vunpack.c.l.b16 %v306
    %v1010 = vunpack.c.h.b16 %v306
    %v1011 = vunpack.c.l.b16 %v307
    %v1012 = vunpack.c.h.b16 %v307
    %v1013 = vunpack.c.l.b16 %v308
    %v1014 = vunpack.c.h.b16 %v308
    %v1015 = vunpack.c.l.b16 %v309
    %v1016 = vunpack.c.h.b16 %v309
    %v1017 = vunpack.c.l.b16 %v310
    %v1018 = vunpack.c.h.b16 %v310
    %v1019 = vunpack.c.l.b16 %v311
    %v1020 = vunpack.c.h.b16 %v311
    %v1021 = vunpack.c.l.b16 %v312
    %v1022 = vunpack.c.h.b16 %v312
    %v1023 = vunpack.c.l.b16 %v313
    %v1024 = vunpack.c.h.b16 %v313
    %v1025 = vunpack.c.l.b16 %v314
    %v1026 = vunpack.c.h.b16 %v314
    %v1027 = vunpack.c.l.b16 %v315
    %v1028 = vunpack.c.h.b16 %v315
    %v1029 = vunpack.c.l.b16 %v316
    %v1030 = vunpack.c.h.b16 %v316
    %v1031 = vunpack.c.l.b16 %v317
    %v1032 = vunpack.c.h.b16 %v317
    %v1033 = vunpack.c.l.b16 %v318
    %v1034 = vunpack.c.h.b16 %v318
    %v1035 = vunpack.c.l.b16 %v319
    %v1036 = vunpack.c.h.b16 %v319
    %v1037 = vunpack.c.l.b16 %v320
    %v1038 = vunpack.c.h.b16 %v320
    %v1039 = vunpack.c.l.b16 %v321
    %v1040 = vunpack.c.h.b16 %v321
    %v1041 = vunpack.c.l.b16 %v322
    %v1042 = vunpack.c.h.b16 %v322
    %v1043 = vunpack.c.l.b16 %v323
    %v1044 = vunpack.c.h.b16 %v323
    %v1045 = vunpack.c.l.b16 %v324
    %v1046 = vunpack.c.h.b16 %v324
    %v1047 = vunpack.c.l.b16 %v325
    %v1048 = vunpack.c.h.b16 %v325
    %v1049 = vunpack.c.l.b16 %v326
    %v1050 = vunpack.c.h.b16 %v326
    %v1051 = vunpack.c.l.b16 %v327
    %v1052 = vunpack.c.h.b16 %v327
    %v1053 = vunpack.c.l.b16 %v328
    %v1054 = vunpack.c.h.b16 %v328
    %v1055 = vunpack.c.l.b16 %v329
    %v1056 = vunpack.c.h.b16 %v329
    %v1057 = vunpack.c.l.b16 %v330
    %v1058 = vunpack.c.h.b16 %v330
    %v1059 = vunpack.c.l.b16 %v331
    %v1060 = vunpack.c.h.b16 %v331
    %v1061 = vunpack.c.l.b16 %v332
    %v1062 = vunpack.c.h.b16 %v332
    %v1063 = vunpack.c.l.b16 %v333
    %v1064 = vunpack.c.h.b16 %v333
    %v1065 = vunpack.c.l.b16 %v334
    %v1066 = vunpack.c.h.b16 %v334
    %v1067 = vunpack.c.l.b16 %v335
    %v1068 = vunpack.c.h.b16 %v335
    %v1069 = vunpack.c.l.b16 %v336
    %v1070 = vunpack.c.h.b16 %v336
    %v1071 = vunpack.c.l.b16 %v337
    %v1072 = vunpack.c.h.b16 %v337
    %v1073 = vunpack.c.l.b16 %v338
    %v1074 = vunpack.c.h.b16 %v338
    %v1075 = vunpack.c.l.b16 %v339
    %v1076 = vunpack.c.h.b16 %v339
    %v1077 = vunpack.c.l.b16 %v340
    %v1078 = vunpack.c.h.b16 %v340
    %v1079 = vunpack.c.l.b16 %v341
    %v1080 = vunpack.c.h.b16 %v341
    %v1081 = vunpack.c.l.b16 %v342
    %v1082 = vunpack.c.h.b16 %v342
    %v1083 = vunpack.c.l.b16 %v343
    %v1084 = vunpack.c.h.b16 %v343
    %v1085 = vunpack.c.l.b16 %v344
    %v1086 = vunpack.c.h.b16 %v344
    %v1087 = vunpack.c.l.b16 %v345
    %v1088 = vunpack.c.h.b16 %v345
    %v1089 = vunpack.c.l.b16 %v346
    %v1090 = vunpack.c.h.b16 %v346
    %v1091 = vunpack.c.l.b16 %v347
    %v1092 = vunpack.c.h.b16 %v347
    %v1093 = vunpack.c.l.b16 %v348
    %v1094 = vunpack.c.h.b16 %v348
    %v1095 = vunpack.c.l.b16 %v349
    %v1096 = vunpack.c.h.b16 %v349
    %v1097 = vunpack.c.l.b16 %v350
    %v1098 = vunpack.c.h.b16 %v350
    %v1099 = vunpack.c.l.b16 %v351
    %v1100 = vunpack.c.h.b16 %v351
    %v1101 = vunpack.c.l.b16 %v352
    %v1102 = vunpack.c.h.b16 %v352
    %v1103 = vunpack.c.l.b16 %v353
    %v1104 = vunpack.c.h.b16 %v353
    %v1105 = vunpack.c.l.b16 %v354
    %v1106 = vunpack.c.h.b16 %v354
    %v1107 = vunpack.c.l.b16 %v355
    %v1108 = vunpack.c.h.b16 %v355
    %v1109 = vunpack.c.l.b16 %v356
    %v1110 = vunpack.c.h.b16 %v356
    %v1111 = vunpack.c.l.b16 %v357
    %v1112 = vunpack.c.h.b16 %v357
    %v1113 = vunpack.c.l.b16 %v358
    %v1114 = vunpack.c.h.b16 %v358
    %v1115 = vunpack.c.l.b16 %v359
    %v1116 = vunpack.c.h.b16 %v359
    %v1117 = vunpack.c.l.b16 %v360
    %v1118 = vunpack.c.h.b16 %v360
    %v1119 = vunpack.c.l.b16 %v361
    %v1120 = vunpack.c.h.b16 %v361
    %v1121 = vunpack.c.l.b16 %v362
    %v1122 = vunpack.c.h.b16 %v362
    %v1123 = vunpack.c.l.b16 %v363
    %v1124 = vunpack.c.h.b16 %v363
    %v1125 = vunpack.c.l.b16 %v364
    %v1126 = vunpack.c.h.b16 %v364
    %v1127 = vunpack.c.l.b16 %v365
    %v1128 = vunpack.c.h.b16 %v365
    %v1129 = vunpack.c.l.b16 %v366
    %v1130 = vunpack.c.h.b16 %v366
    %v1131 = vunpack.c.l.b16 %v367
    %v1132 = vunpack.c.h.b16 %v367
    %v1133 = vunpack.c.l.b16 %v368
    %v1134 = vunpack.c.h.b16 %v368
    %v1135 = vunpack.c.l.b16 %v369
    %v1136 = vunpack.c.h.b16 %v369
    %v1137 = vunpack.c.l.b16 %v370
    %v1138 = vunpack.c.h.b16 %v370
    %v1139 = vunpack.c.l.b16 %v371
    %v1140 = vunpack.c.h.b16 %v371
    %v1141 = vunpack.c.l.b16 %v372
    %v1142 = vunpack.c.h.b16 %v372
    %v1143 = vunpack.c.l.b16 %v373
    %v1144 = vunpack.c.h.b16 %v373
    %v1145 = vunpack.c.l.b16 %v374
    %v1146 = vunpack.c.h.b16 %v374
    %v1147 = vunpack.c.l.b16 %v375
    %v1148 = vunpack.c.h.b16 %v375
    %v1149 = vunpack.c.l.b16 %v376
    %v1150 = vunpack.c.h.b16 %v376
    %v1151 = vunpack.c.l.b16 %v377
    %v1152 = vunpack.c.h.b16 %v377
    %v1153 = vunpack.c.l.b16 %v378
    %v1154 = vunpack.c.h.b16 %v378
    %v1155 = vunpack.c.l.b16 %v379
    %v1156 = vunpack.c.h.b16 %v379
    %v1157 = vunpack.c.l.b16 %v380
    %v1158 = vunpack.c.h.b16 %v380
    %v1159 = vunpack.c.l.b16 %v381
    %v1160 = vunpack.c.h.b16 %v381
    %v1161 = vunpack.c.l.b16 %v382
    %v1162 = vunpack.c.h.b16 %v382
    %v1163 = vunpack.c.l.b16 %v383
    %v1164 = vunpack.c.h.b16 %v383
    %v1165 = vunpack.c.l.b16 %v384
    %v1166 = vunpack.c.h.b16 %v384
    %v1167 = vunpack.c.l.b16 %v385
    %v1168 = vunpack.c.h.b16 %v385
    %v1169 = vunpack.c.l.b16 %v386
    %v1170 = vunpack.c.h.b16 %v386
    %v1171 = vunpack.c.l.b16 %v387
    %v1172 = vunpack.c.h.b16 %v387
    %v1173 = vunpack.c.l.b16 %v388
    %v1174 = vunpack.c.h.b16 %v388
    %v1175 = vunpack.c.l.b16 %v389
    %v1176 = vunpack.c.h.b16 %v389
    %v1177 = vunpack.c.l.b16 %v390
    %v1178 = vunpack.c.h.b16 %v390
    %v1179 = vunpack.c.l.b16 %v391
    %v1180 = vunpack.c.h.b16 %v391
    %v1181 = vunpack.c.l.b16 %v392
    %v1182 = vunpack.c.h.b16 %v392
    %v1183 = vpack.c.b16 %v675, %v671
    %v1184 = vpack.c.b16 %v676, %v672
    %v1185 = vpack.c.b16 %v677, %v673
    %v1186 = vpack.c.b16 %v678, %v674
    %v1187 = vpack.c.b16 %v683, %v679
    %v1188 = vpack.c.b16 %v684, %v680
    %v1189 = vpack.c.b16 %v685, %v681
    %v1190 = vpack.c.b16 %v686, %v682
    %v1191 = vpack.c.b16 %v691, %v687
    %v1192 = vpack.c.b16 %v692, %v688
    %v1193 = vpack.c.b16 %v693, %v689
    %v1194 = vpack.c.b16 %v694, %v690
    %v1195 = vpack.c.b16 %v699, %v695
    %v1196 = vpack.c.b16 %v700, %v696
    %v1197 = vpack.c.b16 %v701, %v697
    %v1198 = vpack.c.b16 %v702, %v698
    %v1199 = vpack.c.b16 %v707, %v703
    %v1200 = vpack.c.b16 %v708, %v704
    %v1201 = vpack.c.b16 %v709, %v705
    %v1202 = vpack.c.b16 %v710, %v706
    %v1203 = vpack.c.b16 %v715, %v711
    %v1204 = vpack.c.b16 %v716, %v712
    %v1205 = vpack.c.b16 %v717, %v713
    %v1206 = vpack.c.b16 %v718, %v714
    %v1207 = vpack.c.b16 %v723, %v719
    %v1208 = vpack.c.b16 %v724, %v720
    %v1209 = vpack.c.b16 %v725, %v721
    %v1210 = vpack.c.b16 %v726, %v722
    %v1211 = vpack.c.b16 %v731, %v727
    %v1212 = vpack.c.b16 %v732, %v728
    %v1213 = vpack.c.b16 %v733, %v729
    %v1214 = vpack.c.b16 %v734, %v730
    %v1215 = vpack.c.b16 %v739, %v735
    %v1216 = vpack.c.b16 %v740, %v736
    %v1217 = vpack.c.b16 %v741, %v737
    %v1218 = vpack.c.b16 %v742, %v738
    %v1219 = vpack.c.b16 %v747, %v743
    %v1220 = vpack.c.b16 %v748, %v744
    %v1221 = vpack.c.b16 %v749, %v745
    %v1222 = vpack.c.b16 %v750, %v746
    %v1223 = vpack.c.b16 %v755, %v751
    %v1224 = vpack.c.b16 %v756, %v752
    %v1225 = vpack.c.b16 %v757, %v753
    %v1226 = vpack.c.b16 %v758, %v754
    %v1227 = vpack.c.b16 %v763, %v759
    %v1228 = vpack.c.b16 %v764, %v760
    %v1229 = vpack.c.b16 %v765, %v761
    %v1230 = vpack.c.b16 %v766, %v762
    %v1231 = vpack.c.b16 %v771, %v767
    %v1232 = vpack.c.b16 %v772, %v768
    %v1233 = vpack.c.b16 %v773, %v769
    %v1234 = vpack.c.b16 %v774, %v770
    %v1235 = vpack.c.b16 %v779, %v775
    %v1236 = vpack.c.b16 %v780, %v776
    %v1237 = vpack.c.b16 %v781, %v777
    %v1238 = vpack.c.b16 %v782, %v778
    %v1239 = vpack.c.b16 %v787, %v783
    %v1240 = vpack.c.b16 %v788, %v784
    %v1241 = vpack.c.b16 %v789, %v785
    %v1242 = vpack.c.b16 %v790, %v786
    %v1243 = vpack.c.b16 %v795, %v791
    %v1244 = vpack.c.b16 %v796, %v792
    %v1245 = vpack.c.b16 %v797, %v793
    %v1246 = vpack.c.b16 %v798, %v794
    %v1247 = vpack.c.b16 %v803, %v799
    %v1248 = vpack.c.b16 %v804, %v800
    %v1249 = vpack.c.b16 %v805, %v801
    %v1250 = vpack.c.b16 %v806, %v802
    %v1251 = vpack.c.b16 %v811, %v807
    %v1252 = vpack.c.b16 %v812, %v808
    %v1253 = vpack.c.b16 %v813, %v809
    %v1254 = vpack.c.b16 %v814, %v810
    %v1255 = vpack.c.b16 %v819, %v815
    %v1256 = vpack.c.b16 %v820, %v816
    %v1257 = vpack.c.b16 %v821, %v817
    %v1258 = vpack.c.b16 %v822, %v818
    %v1259 = vpack.c.b16 %v827, %v823
    %v1260 = vpack.c.b16 %v828, %v824
    %v1261 = vpack.c.b16 %v829, %v825
    %v1262 = vpack.c.b16 %v830, %v826
    %v1263 = vpack.c.b16 %v835, %v831
    %v1264 = vpack.c.b16 %v836, %v832
    %v1265 = vpack.c.b16 %v837, %v833
    %v1266 = vpack.c.b16 %v838, %v834
    %v1267 = vpack.c.b16 %v843, %v839
    %v1268 = vpack.c.b16 %v844, %v840
    %v1269 = vpack.c.b16 %v845, %v841
    %v1270 = vpack.c.b16 %v846, %v842
    %v1271 = vpack.c.b16 %v851, %v847
    %v1272 = vpack.c.b16 %v852, %v848
    %v1273 = vpack.c.b16 %v853, %v849
    %v1274 = vpack.c.b16 %v854, %v850
    %v1275 = vpack.c.b16 %v859, %v855
    %v1276 = vpack.c.b16 %v860, %v856
    %v1277 = vpack.c.b16 %v861, %v857
    %v1278 = vpack.c.b16 %v862, %v858
    %v1279 = vpack.c.b16 %v867, %v863
    %v1280 = vpack.c.b16 %v868, %v864
    %v1281 = vpack.c.b16 %v869, %v865
    %v1282 = vpack.c.b16 %v870, %v866
    %v1283 = vpack.c.b16 %v875, %v871
    %v1284 = vpack.c.b16 %v876, %v872
    %v1285 = vpack.c.b16 %v877, %v873
    %v1286 = vpack.c.b16 %v878, %v874
    %v1287 = vpack.c.b16 %v883, %v879
    %v1288 = vpack.c.b16 %v884, %v880
    %v1289 = vpack.c.b16 %v885, %v881
    %v1290 = vpack.c.b16 %v886, %v882
    %v1291 = vpack.c.b16 %v891, %v887
    %v1292 = vpack.c.b16 %v892, %v888
    %v1293 = vpack.c.b16 %v893, %v889
    %v1294 = vpack.c.b16 %v894, %v890
    %v1295 = vpack.c.b16 %v899, %v895
    %v1296 = vpack.c.b16 %v900, %v896
    %v1297 = vpack.c.b16 %v901, %v897
    %v1298 = vpack.c.b16 %v902, %v898
    %v1299 = vpack.c.b16 %v907, %v903
    %v1300 = vpack.c.b16 %v908, %v904
    %v1301 = vpack.c.b16 %v909, %v905
    %v1302 = vpack.c.b16 %v910, %v906
    %v1303 = vpack.c.b16 %v915, %v911
    %v1304 = vpack.c.b16 %v916, %v912
    %v1305 = vpack.c.b16 %v917, %v913
    %v1306 = vpack.c.b16 %v918, %v914
    %v1307 = vpack.c.b16 %v923, %v919
    %v1308 = vpack.c.b16 %v924, %v920
    %v1309 = vpack.c.b16 %v925, %v921
    %v1310 = vpack.c.b16 %v926, %v922
    %v1311 = vpack.c.b16 %v931, %v927
    %v1312 = vpack.c.b16 %v932, %v928
    %v1313 = vpack.c.b16 %v933, %v929
    %v1314 = vpack.c.b16 %v934, %v930
    %v1315 = vpack.c.b16 %v939, %v935
    %v1316 = vpack.c.b16 %v940, %v936
    %v1317 = vpack.c.b16 %v941, %v937
    %v1318 = vpack.c.b16 %v942, %v938
    %v1319 = vpack.c.b16 %v947, %v943
    %v1320 = vpack.c.b16 %v948, %v944
    %v1321 = vpack.c.b16 %v949, %v945
    %v1322 = vpack.c.b16 %v950, %v946
    %v1323 = vpack.c.b16 %v955, %v951
    %v1324 = vpack.c.b16 %v956, %v952
    %v1325 = vpack.c.b16 %v957, %v953
    %v1326 = vpack.c.b16 %v958, %v954
    %v1327 = vpack.c.b16 %v963, %v959
    %v1328 = vpack.c.b16 %v964, %v960
    %v1329 = vpack.c.b16 %v965, %v961
    %v1330 = vpack.c.b16 %v966, %v962
    %v1331 = vpack.c.b16 %v971, %v967
    %v1332 = vpack.c.b16 %v972, %v968
    %v1333 = vpack.c.b16 %v973, %v969
    %v1334 = vpack.c.b16 %v974, %v970
    %v1335 = vpack.c.b16 %v979, %v975
    %v1336 = vpack.c.b16 %v980, %v976
    %v1337 = vpack.c.b16 %v981, %v977
    %v1338 = vpack.c.b16 %v982, %v978
    %v1339 = vpack.c.b16 %v987, %v983
    %v1340 = vpack.c.b16 %v988, %v984
    %v1341 = vpack.c.b16 %v989, %v985
    %v1342 = vpack.c.b16 %v990, %v986
    %v1343 = vpack.c.b16 %v995, %v991
    %v1344 = vpack.c.b16 %v996, %v992
    %v1345 = vpack.c.b16 %v997, %v993
    %v1346 = vpack.c.b16 %v998, %v994
    %v1347 = vpack.c.b16 %v1003, %v999
    %v1348 = vpack.c.b16 %v1004, %v1000
    %v1349 = vpack.c.b16 %v1005, %v1001
    %v1350 = vpack.c.b16 %v1006, %v1002
    %v1351 = vpack.c.b16 %v1011, %v1007
    %v1352 = vpack.c.b16 %v1012, %v1008
    %v1353 = vpack.c.b16 %v1013, %v1009
    %v1354 = vpack.c.b16 %v1014, %v1010
    %v1355 = vpack.c.b16 %v1019, %v1015
    %v1356 = vpack.c.b16 %v1020, %v1016
    %v1357 = vpack.c.b16 %v1021, %v1017
    %v1358 = vpack.c.b16 %v1022, %v1018
    %v1359 = vpack.c.b16 %v1027, %v1023
    %v1360 = vpack.c.b16 %v1028, %v1024
    %v1361 = vpack.c.b16 %v1029, %v1025
    %v1362 = vpack.c.b16 %v1030, %v1026
    %v1363 = vpack.c.b16 %v1035, %v1031
    %v1364 = vpack.c.b16 %v1036, %v1032
    %v1365 = vpack.c.b16 %v1037, %v1033
    %v1366 = vpack.c.b16 %v1038, %v1034
    %v1367 = vpack.c.b16 %v1043, %v1039
    %v1368 = vpack.c.b16 %v1044, %v1040
    %v1369 = vpack.c.b16 %v1045, %v1041
    %v1370 = vpack.c.b16 %v1046, %v1042
    %v1371 = vpack.c.b16 %v1051, %v1047
    %v1372 = vpack.c.b16 %v1052, %v1048
    %v1373 = vpack.c.b16 %v1053, %v1049
    %v1374 = vpack.c.b16 %v1054, %v1050
    %v1375 = vpack.c.b16 %v1059, %v1055
    %v1376 = vpack.c.b16 %v1060, %v1056
    %v1377 = vpack.c.b16 %v1061, %v1057
    %v1378 = vpack.c.b16 %v1062, %v1058
    %v1379 = vpack.c.b16 %v1067, %v1063
    %v1380 = vpack.c.b16 %v1068, %v1064
    %v1381 = vpack.c.b16 %v1069, %v1065
    %v1382 = vpack.c.b16 %v1070, %v1066
    %v1383 = vpack.c.b16 %v1075, %v1071
    %v1384 = vpack.c.b16 %v1076, %v1072
    %v1385 = vpack.c.b16 %v1077, %v1073
    %v1386 = vpack.c.b16 %v1078, %v1074
    %v1387 = vpack.c.b16 %v1083, %v1079
    %v1388 = vpack.c.b16 %v1084, %v1080
    %v1389 = vpack.c.b16 %v1085, %v1081
    %v1390 = vpack.c.b16 %v1086, %v1082
    %v1391 = vpack.c.b16 %v1091, %v1087
    %v1392 = vpack.c.b16 %v1092, %v1088
    %v1393 = vpack.c.b16 %v1093, %v1089
    %v1394 = vpack.c.b16 %v1094, %v1090
    %v1395 = vpack.c.b16 %v1099, %v1095
    %v1396 = vpack.c.b16 %v1100, %v1096
    %v1397 = vpack.c.b16 %v1101, %v1097
    %v1398 = vpack.c.b16 %v1102, %v1098
    %v1399 = vpack.c.b16 %v1107, %v1103
    %v1400 = vpack.c.b16 %v1108, %v1104
    %v1401 = vpack.c.b16 %v1109, %v1105
    %v1402 = vpack.c.b16 %v1110, %v1106
    %v1403 = vpack.c.b16 %v1115, %v1111
    %v1404 = vpack.c.b16 %v1116, %v1112
    %v1405 = vpack.c.b16 %v1117, %v1113
    %v1406 = vpack.c.b16 %v1118, %v1114
    %v1407 = vpack.c.b16 %v1123, %v1119
    %v1408 = vpack.c.b16 %v1124, %v1120
    %v1409 = vpack.c.b16 %v1125, %v1121
    %v1410 = vpack.c.b16 %v1126, %v1122
    %v1411 = vpack.c.b16 %v1131, %v1127
    %v1412 = vpack.c.b16 %v1132, %v1128
    %v1413 = vpack.c.b16 %v1133, %v1129
    %v1414 = vpack.c.b16 %v1134, %v1130
    %v1415 = vpack.c.b16 %v1139, %v1135
    %v1416 = vpack.c.b16 %v1140, %v1136
    %v1417 = vpack.c.b16 %v1141, %v1137
    %v1418 = vpack.c.b16 %v1142, %v1138
    %v1419 = vpack.c.b16 %v1147, %v1143
    %v1420 = vpack.c.b16 %v1148, %v1144
    %v1421 = vpack.c.b16 %v1149, %v1145
    %v1422 = vpack.c.b16 %v1150, %v1146
    %v1423 = vpack.c.b16 %v1155, %v1151
    %v1424 = vpack.c.b16 %v1156, %v1152
    %v1425 = vpack.c.b16 %v1157, %v1153
    %v1426 = vpack.c.b16 %v1158, %v1154
    %v1427 = vpack.c.b16 %v1163, %v1159
    %v1428 = vpack.c.b16 %v1164, %v1160
    %v1429 = vpack.c.b16 %v1165, %v1161
    %v1430 = vpack.c.b16 %v1166, %v1162
    %v1431 = vpack.c.b16 %v1171, %v1167
    %v1432 = vpack.c.b16 %v1172, %v1168
    %v1433 = vpack.c.b16 %v1173, %v1169
    %v1434 = vpack.c.b16 %v1174, %v1170
    %v1435 = vpack.c.b16 %v1179, %v1175
    %v1436 = vpack.c.b16 %v1180, %v1176
    %v1437 = vpack.c.b16 %v1181, %v1177
    %v1438 = vpack.c.b16 %v1182, %v1178
    %1695 = vmatprep.subr.bf16.mxu0 %v1184
    %1696 = vmatpush1.bf16.msra.mxu0 %v1183
    %1697 = vmatprep.subr.bf16.mxu0 %v1188
    %1698 = vmatpush1.bf16.msra.mxu0 %v1187
    %1699 = vmatprep.subr.bf16.mxu0 %v1192
    %1700 = vmatpush1.bf16.msra.mxu0 %v1191
    %1701 = vmatprep.subr.bf16.mxu0 %v1196
    %1702 = vmatpush1.bf16.msra.mxu0 %v1195
    %1703 = vmatprep.subr.bf16.mxu0 %v1200
    %1704 = vmatpush1.bf16.msra.mxu0 %v1199
    %1705 = vmatprep.subr.bf16.mxu0 %v1204
    %1706 = vmatpush1.bf16.msra.mxu0 %v1203
    %1707 = vmatprep.subr.bf16.mxu0 %v1208
    %1708 = vmatpush1.bf16.msra.mxu0 %v1207
    %1709 = vmatprep.subr.bf16.mxu0 %v1212
    %1710 = vmatpush1.bf16.msra.mxu0 %v1211
    %1711 = vmatprep.subr.bf16.mxu0 %v1216
    %1712 = vmatpush1.bf16.msra.mxu0 %v1215
    %1713 = vmatprep.subr.bf16.mxu0 %v1220
    %1714 = vmatpush1.bf16.msra.mxu0 %v1219
    %1715 = vmatprep.subr.bf16.mxu0 %v1224
    %1716 = vmatpush1.bf16.msra.mxu0 %v1223
    %1717 = vmatprep.subr.bf16.mxu0 %v1228
    %1718 = vmatpush1.bf16.msra.mxu0 %v1227
    %1719 = vmatprep.subr.bf16.mxu0 %v1232
    %1720 = vmatpush1.bf16.msra.mxu0 %v1231
    %1721 = vmatprep.subr.bf16.mxu0 %v1236
    %1722 = vmatpush1.bf16.msra.mxu0 %v1235
    %1723 = vmatprep.subr.bf16.mxu0 %v1240
    %1724 = vmatpush1.bf16.msra.mxu0 %v1239
    %1725 = vmatprep.subr.bf16.mxu0 %v1244
    %1726 = vmatpush1.bf16.msra.mxu0 %v1243
    %1727 = vmatprep.mubr.bf16.mxu0 %v130
    %1728 = vmatmul.mubr.bf16.gmra.mrb[0].mxu0 %v129
    %v1729 = vpop.f32.mrb[0].mxu0
    %v1730 = vadd.f32 %v398, %v1729
    %v1731 = vpop.f32.mrb[0].mxu0
    %v1732 = vadd.f32 %v402, %v1731
    %v1733 = vpop.f32.mrb[0].mxu0
    %v1734 = vpop.f32.mrb[0].mxu0
    %1735 = vdwg.mxu0
    %1736 = vmatprep.subr.bf16.mxu0 %v1248
    %1737 = vmatpush1.bf16.msra.mxu0 %v1247
    %1738 = vmatprep.subr.bf16.mxu0 %v1252
    %1739 = vmatpush1.bf16.msra.mxu0 %v1251
    %1740 = vmatprep.subr.bf16.mxu0 %v1256
    %1741 = vmatpush1.bf16.msra.mxu0 %v1255
    %1742 = vmatprep.subr.bf16.mxu0 %v1260
    %1743 = vmatpush1.bf16.msra.mxu0 %v1259
    %1744 = vmatprep.subr.bf16.mxu0 %v1264
    %1745 = vmatpush1.bf16.msra.mxu0 %v1263
    %1746 = vmatprep.subr.bf16.mxu0 %v1268
    %1747 = vmatpush1.bf16.msra.mxu0 %v1267
    %1748 = vmatprep.subr.bf16.mxu0 %v1272
    %1749 = vmatpush1.bf16.msra.mxu0 %v1271
    %1750 = vmatprep.subr.bf16.mxu0 %v1276
    %1751 = vmatpush1.bf16.msra.mxu0 %v1275
    %1752 = vmatprep.subr.bf16.mxu0 %v1280
    %1753 = vmatpush1.bf16.msra.mxu0 %v1279
    %1754 = vmatprep.subr.bf16.mxu0 %v1284
    %1755 = vmatpush1.bf16.msra.mxu0 %v1283
    %1756 = vmatprep.subr.bf16.mxu0 %v1288
    %1757 = vmatpush1.bf16.msra.mxu0 %v1287
    %1758 = vmatprep.subr.bf16.mxu0 %v1292
    %1759 = vmatpush1.bf16.msra.mxu0 %v1291
    %1760 = vmatprep.subr.bf16.mxu0 %v1296
    %1761 = vmatpush1.bf16.msra.mxu0 %v1295
    %1762 = vmatprep.subr.bf16.mxu0 %v1300
    %1763 = vmatpush1.bf16.msra.mxu0 %v1299
    %1764 = vmatprep.subr.bf16.mxu0 %v1304
    %1765 = vmatpush1.bf16.msra.mxu0 %v1303
    %1766 = vmatprep.subr.bf16.mxu0 %v1308
    %1767 = vmatpush1.bf16.msra.mxu0 %v1307
    %1768 = vmatprep.mubr.bf16.mxu0 %v132
    %1769 = vmatmul.mubr.bf16.gmra.mrb[0].mxu0 %v131
    %v1770 = vpop.f32.mrb[0].mxu0
    %v1771 = vadd.f32 %v1730, %v1770
    %v1772 = vpop.f32.mrb[0].mxu0
    %v1773 = vadd.f32 %v1732, %v1772
    %v1774 = vpop.f32.mrb[0].mxu0
    %v1775 = vpop.f32.mrb[0].mxu0
    %1776 = vdwg.mxu0
    %1777 = vmatprep.subr.bf16.mxu0 %v1312
    %1778 = vmatpush1.bf16.msra.mxu0 %v1311
    %1779 = vmatprep.subr.bf16.mxu0 %v1316
    %1780 = vmatpush1.bf16.msra.mxu0 %v1315
    %1781 = vmatprep.subr.bf16.mxu0 %v1320
    %1782 = vmatpush1.bf16.msra.mxu0 %v1319
    %1783 = vmatprep.subr.bf16.mxu0 %v1324
    %1784 = vmatpush1.bf16.msra.mxu0 %v1323
    %1785 = vmatprep.subr.bf16.mxu0 %v1328
    %1786 = vmatpush1.bf16.msra.mxu0 %v1327
    %1787 = vmatprep.subr.bf16.mxu0 %v1332
    %1788 = vmatpush1.bf16.msra.mxu0 %v1331
    %1789 = vmatprep.subr.bf16.mxu0 %v1336
    %1790 = vmatpush1.bf16.msra.mxu0 %v1335
    %1791 = vmatprep.subr.bf16.mxu0 %v1340
    %1792 = vmatpush1.bf16.msra.mxu0 %v1339
    %1793 = vmatprep.subr.bf16.mxu0 %v1344
    %1794 = vmatpush1.bf16.msra.mxu0 %v1343
    %1795 = vmatprep.subr.bf16.mxu0 %v1348
    %1796 = vmatpush1.bf16.msra.mxu0 %v1347
    %1797 = vmatprep.subr.bf16.mxu0 %v1352
    %1798 = vmatpush1.bf16.msra.mxu0 %v1351
    %1799 = vmatprep.subr.bf16.mxu0 %v1356
    %1800 = vmatpush1.bf16.msra.mxu0 %v1355
    %1801 = vmatprep.subr.bf16.mxu0 %v1360
    %1802 = vmatpush1.bf16.msra.mxu0 %v1359
    %1803 = vmatprep.subr.bf16.mxu0 %v1364
    %1804 = vmatpush1.bf16.msra.mxu0 %v1363
    %1805 = vmatprep.subr.bf16.mxu0 %v1368
    %1806 = vmatpush1.bf16.msra.mxu0 %v1367
    %1807 = vmatprep.subr.bf16.mxu0 %v1372
    %1808 = vmatpush1.bf16.msra.mxu0 %v1371
    %1809 = vmatprep.mubr.bf16.mxu0 %v134
    %1810 = vmatmul.mubr.bf16.gmra.mrb[0].mxu0 %v133
    %v1811 = vpop.f32.mrb[0].mxu0
    %v1812 = vadd.f32 %v1771, %v1811
    %v1813 = vpop.f32.mrb[0].mxu0
    %v1814 = vadd.f32 %v1773, %v1813
    %v1815 = vpop.f32.mrb[0].mxu0
    %v1816 = vpop.f32.mrb[0].mxu0
    %1817 = vdwg.mxu0
    %1818 = vmatprep.subr.bf16.mxu0 %v1376
    %1819 = vmatpush1.bf16.msra.mxu0 %v1375
    %1820 = vmatprep.subr.bf16.mxu0 %v1380
    %1821 = vmatpush1.bf16.msra.mxu0 %v1379
    %1822 = vmatprep.subr.bf16.mxu0 %v1384
    %1823 = vmatpush1.bf16.msra.mxu0 %v1383
    %1824 = vmatprep.subr.bf16.mxu0 %v1388
    %1825 = vmatpush1.bf16.msra.mxu0 %v1387
    %1826 = vmatprep.subr.bf16.mxu0 %v1392
    %1827 = vmatpush1.bf16.msra.mxu0 %v1391
    %1828 = vmatprep.subr.bf16.mxu0 %v1396
    %1829 = vmatpush1.bf16.msra.mxu0 %v1395
    %1830 = vmatprep.subr.bf16.mxu0 %v1400
    %1831 = vmatpush1.bf16.msra.mxu0 %v1399
    %1832 = vmatprep.subr.bf16.mxu0 %v1404
    %1833 = vmatpush1.bf16.msra.mxu0 %v1403
    %1834 = vmatprep.subr.bf16.mxu0 %v1408
    %1835 = vmatpush1.bf16.msra.mxu0 %v1407
    %1836 = vmatprep.subr.bf16.mxu0 %v1412
    %1837 = vmatpush1.bf16.msra.mxu0 %v1411
    %1838 = vmatprep.subr.bf16.mxu0 %v1416
    %1839 = vmatpush1.bf16.msra.mxu0 %v1415
    %1840 = vmatprep.subr.bf16.mxu0 %v1420
    %1841 = vmatpush1.bf16.msra.mxu0 %v1419
    %1842 = vmatprep.subr.bf16.mxu0 %v1424
    %1843 = vmatpush1.bf16.msra.mxu0 %v1423
    %1844 = vmatprep.subr.bf16.mxu0 %v1428
    %1845 = vmatpush1.bf16.msra.mxu0 %v1427
    %1846 = vmatprep.subr.bf16.mxu0 %v1432
    %1847 = vmatpush1.bf16.msra.mxu0 %v1431
    %1848 = vmatprep.subr.bf16.mxu0 %v1436
    %1849 = vmatpush1.bf16.msra.mxu0 %v1435
    %1850 = vmatprep.mubr.bf16.mxu0 %v136
    %1851 = vmatmul.mubr.bf16.gmra.mrb[0].mxu0 %v135
    %v1852 = vpop.f32.mrb[0].mxu0
    %v1853 = vadd.f32 %v1812, %v1852
    %v1854 = vpop.f32.mrb[0].mxu0
    %v1855 = vadd.f32 %v1814, %v1854
    %v1856 = vpop.f32.mrb[0].mxu0
    %v1857 = vpop.f32.mrb[0].mxu0
    %1858 = vdwg.mxu0
    %1859 = vmatprep.subr.bf16.mxu0 %v1186
    %1860 = vmatpush1.bf16.msra.mxu0 %v1185
    %1861 = vmatprep.subr.bf16.mxu0 %v1190
    %1862 = vmatpush1.bf16.msra.mxu0 %v1189
    %1863 = vmatprep.subr.bf16.mxu0 %v1194
    %1864 = vmatpush1.bf16.msra.mxu0 %v1193
    %1865 = vmatprep.subr.bf16.mxu0 %v1198
    %1866 = vmatpush1.bf16.msra.mxu0 %v1197
    %1867 = vmatprep.subr.bf16.mxu0 %v1202
    %1868 = vmatpush1.bf16.msra.mxu0 %v1201
    %1869 = vmatprep.subr.bf16.mxu0 %v1206
    %1870 = vmatpush1.bf16.msra.mxu0 %v1205
    %1871 = vmatprep.subr.bf16.mxu0 %v1210
    %1872 = vmatpush1.bf16.msra.mxu0 %v1209
    %1873 = vmatprep.subr.bf16.mxu0 %v1214
    %1874 = vmatpush1.bf16.msra.mxu0 %v1213
    %1875 = vmatprep.subr.bf16.mxu0 %v1218
    %1876 = vmatpush1.bf16.msra.mxu0 %v1217
    %1877 = vmatprep.subr.bf16.mxu0 %v1222
    %1878 = vmatpush1.bf16.msra.mxu0 %v1221
    %1879 = vmatprep.subr.bf16.mxu0 %v1226
    %1880 = vmatpush1.bf16.msra.mxu0 %v1225
    %1881 = vmatprep.subr.bf16.mxu0 %v1230
    %1882 = vmatpush1.bf16.msra.mxu0 %v1229
    %1883 = vmatprep.subr.bf16.mxu0 %v1234
    %1884 = vmatpush1.bf16.msra.mxu0 %v1233
    %1885 = vmatprep.subr.bf16.mxu0 %v1238
    %1886 = vmatpush1.bf16.msra.mxu0 %v1237
    %1887 = vmatprep.subr.bf16.mxu0 %v1242
    %1888 = vmatpush1.bf16.msra.mxu0 %v1241
    %1889 = vmatprep.subr.bf16.mxu0 %v1246
    %1890 = vmatpush1.bf16.msra.mxu0 %v1245
    %1891 = vmatprep.mubr.bf16.mxu0 %v130
    %1892 = vmatmul.mubr.bf16.gmra.mrb[0].mxu0 %v129
    %v1893 = vpop.f32.mrb[0].mxu0
    %v1894 = vadd.f32 %v406, %v1893
    %v1895 = vpop.f32.mrb[0].mxu0
    %v1896 = vadd.f32 %v410, %v1895
    %v1897 = vpop.f32.mrb[0].mxu0
    %v1898 = vpop.f32.mrb[0].mxu0
    %1899 = vdwg.mxu0
    %1900 = vmatprep.subr.bf16.mxu0 %v1250
    %1901 = vmatpush1.bf16.msra.mxu0 %v1249
    %1902 = vmatprep.subr.bf16.mxu0 %v1254
    %1903 = vmatpush1.bf16.msra.mxu0 %v1253
    %1904 = vmatprep.subr.bf16.mxu0 %v1258
    %1905 = vmatpush1.bf16.msra.mxu0 %v1257
    %1906 = vmatprep.subr.bf16.mxu0 %v1262
    %1907 = vmatpush1.bf16.msra.mxu0 %v1261
    %1908 = vmatprep.subr.bf16.mxu0 %v1266
    %1909 = vmatpush1.bf16.msra.mxu0 %v1265
    %1910 = vmatprep.subr.bf16.mxu0 %v1270
    %1911 = vmatpush1.bf16.msra.mxu0 %v1269
    %1912 = vmatprep.subr.bf16.mxu0 %v1274
    %1913 = vmatpush1.bf16.msra.mxu0 %v1273
    %1914 = vmatprep.subr.bf16.mxu0 %v1278
    %1915 = vmatpush1.bf16.msra.mxu0 %v1277
    %1916 = vmatprep.subr.bf16.mxu0 %v1282
    %1917 = vmatpush1.bf16.msra.mxu0 %v1281
    %1918 = vmatprep.subr.bf16.mxu0 %v1286
    %1919 = vmatpush1.bf16.msra.mxu0 %v1285
    %1920 = vmatprep.subr.bf16.mxu0 %v1290
    %1921 = vmatpush1.bf16.msra.mxu0 %v1289
    %1922 = vmatprep.subr.bf16.mxu0 %v1294
    %1923 = vmatpush1.bf16.msra.mxu0 %v1293
    %1924 = vmatprep.subr.bf16.mxu0 %v1298
    %1925 = vmatpush1.bf16.msra.mxu0 %v1297
    %1926 = vmatprep.subr.bf16.mxu0 %v1302
    %1927 = vmatpush1.bf16.msra.mxu0 %v1301
    %1928 = vmatprep.subr.bf16.mxu0 %v1306
    %1929 = vmatpush1.bf16.msra.mxu0 %v1305
    %1930 = vmatprep.subr.bf16.mxu0 %v1310
    %1931 = vmatpush1.bf16.msra.mxu0 %v1309
    %1932 = vmatprep.mubr.bf16.mxu0 %v132
    %1933 = vmatmul.mubr.bf16.gmra.mrb[0].mxu0 %v131
    %v1934 = vpop.f32.mrb[0].mxu0
    %v1935 = vadd.f32 %v1894, %v1934
    %v1936 = vpop.f32.mrb[0].mxu0
    %v1937 = vadd.f32 %v1896, %v1936
    %v1938 = vpop.f32.mrb[0].mxu0
    %v1939 = vpop.f32.mrb[0].mxu0
    %1940 = vdwg.mxu0
    %1941 = vmatprep.subr.bf16.mxu0 %v1314
    %1942 = vmatpush1.bf16.msra.mxu0 %v1313
    %1943 = vmatprep.subr.bf16.mxu0 %v1318
    %1944 = vmatpush1.bf16.msra.mxu0 %v1317
    %1945 = vmatprep.subr.bf16.mxu0 %v1322
    %1946 = vmatpush1.bf16.msra.mxu0 %v1321
    %1947 = vmatprep.subr.bf16.mxu0 %v1326
    %1948 = vmatpush1.bf16.msra.mxu0 %v1325
    %1949 = vmatprep.subr.bf16.mxu0 %v1330
    %1950 = vmatpush1.bf16.msra.mxu0 %v1329
    %1951 = vmatprep.subr.bf16.mxu0 %v1334
    %1952 = vmatpush1.bf16.msra.mxu0 %v1333
    %1953 = vmatprep.subr.bf16.mxu0 %v1338
    %1954 = vmatpush1.bf16.msra.mxu0 %v1337
    %1955 = vmatprep.subr.bf16.mxu0 %v1342
    %1956 = vmatpush1.bf16.msra.mxu0 %v1341
    %1957 = vmatprep.subr.bf16.mxu0 %v1346
    %1958 = vmatpush1.bf16.msra.mxu0 %v1345
    %1959 = vmatprep.subr.bf16.mxu0 %v1350
    %1960 = vmatpush1.bf16.msra.mxu0 %v1349
    %1961 = vmatprep.subr.bf16.mxu0 %v1354
    %1962 = vmatpush1.bf16.msra.mxu0 %v1353
    %1963 = vmatprep.subr.bf16.mxu0 %v1358
    %1964 = vmatpush1.bf16.msra.mxu0 %v1357
    %1965 = vmatprep.subr.bf16.mxu0 %v1362
    %1966 = vmatpush1.bf16.msra.mxu0 %v1361
    %1967 = vmatprep.subr.bf16.mxu0 %v1366
    %1968 = vmatpush1.bf16.msra.mxu0 %v1365
    %1969 = vmatprep.subr.bf16.mxu0 %v1370
    %1970 = vmatpush1.bf16.msra.mxu0 %v1369
    %1971 = vmatprep.subr.bf16.mxu0 %v1374
    %1972 = vmatpush1.bf16.msra.mxu0 %v1373
    %1973 = vmatprep.mubr.bf16.mxu0 %v134
    %1974 = vmatmul.mubr.bf16.gmra.mrb[0].mxu0 %v133
    %v1975 = vpop.f32.mrb[0].mxu0
    %v1976 = vadd.f32 %v1935, %v1975
    %v1977 = vpop.f32.mrb[0].mxu0
    %v1978 = vadd.f32 %v1937, %v1977
    %v1979 = vpop.f32.mrb[0].mxu0
    %v1980 = vpop.f32.mrb[0].mxu0
    %1981 = vdwg.mxu0
    %1982 = vmatprep.subr.bf16.mxu0 %v1378
    %1983 = vmatpush1.bf16.msra.mxu0 %v1377
    %1984 = vmatprep.subr.bf16.mxu0 %v1382
    %1985 = vmatpush1.bf16.msra.mxu0 %v1381
    %1986 = vmatprep.subr.bf16.mxu0 %v1386
    %1987 = vmatpush1.bf16.msra.mxu0 %v1385
    %1988 = vmatprep.subr.bf16.mxu0 %v1390
    %1989 = vmatpush1.bf16.msra.mxu0 %v1389
    %1990 = vmatprep.subr.bf16.mxu0 %v1394
    %1991 = vmatpush1.bf16.msra.mxu0 %v1393
    %1992 = vmatprep.subr.bf16.mxu0 %v1398
    %1993 = vmatpush1.bf16.msra.mxu0 %v1397
    %1994 = vmatprep.subr.bf16.mxu0 %v1402
    %1995 = vmatpush1.bf16.msra.mxu0 %v1401
    %1996 = vmatprep.subr.bf16.mxu0 %v1406
    %1997 = vmatpush1.bf16.msra.mxu0 %v1405
    %1998 = vmatprep.subr.bf16.mxu0 %v1410
    %1999 = vmatpush1.bf16.msra.mxu0 %v1409
    %2000 = vmatprep.subr.bf16.mxu0 %v1414
    %2001 = vmatpush1.bf16.msra.mxu0 %v1413
    %2002 = vmatprep.subr.bf16.mxu0 %v1418
    %2003 = vmatpush1.bf16.msra.mxu0 %v1417
    %2004 = vmatprep.subr.bf16.mxu0 %v1422
    %2005 = vmatpush1.bf16.msra.mxu0 %v1421
    %2006 = vmatprep.subr.bf16.mxu0 %v1426
    %2007 = vmatpush1.bf16.msra.mxu0 %v1425
    %2008 = vmatprep.subr.bf16.mxu0 %v1430
    %2009 = vmatpush1.bf16.msra.mxu0 %v1429
    %2010 = vmatprep.subr.bf16.mxu0 %v1434
    %2011 = vmatpush1.bf16.msra.mxu0 %v1433
    %2012 = vmatprep.subr.bf16.mxu0 %v1438
    %2013 = vmatpush1.bf16.msra.mxu0 %v1437
    %2014 = vmatprep.mubr.bf16.mxu0 %v136
    %2015 = vmatmul.mubr.bf16.gmra.mrb[0].mxu0 %v135
    %v2016 = vpop.f32.mrb[0].mxu0
    %v2017 = vadd.f32 %v1976, %v2016
    %v2018 = vpop.f32.mrb[0].mxu0
    %v2019 = vadd.f32 %v1978, %v2018
    %v2020 = vpop.f32.mrb[0].mxu0
    %v2021 = vpop.f32.mrb[0].mxu0
    %2022 = vdwg.mxu0
    %v2023 = vpack.c.bf16 %v1853, %v1853
    %v2024 = vpack.c.bf16 %v1855, %v1855
    %v2025 = vpack.c.bf16 %v2017, %v2017
    %v2026 = vpack.c.bf16 %v2019, %v2019
    %v2027 = vmin.bf16 %v2023, 1101021600
    %v2028 = vmin.bf16 %v2024, 1101021600
    %v2029 = vmin.bf16 %v2025, 1101021600
    %v2030 = vmin.bf16 %v2026, 1101021600
    %v2032 = vmul.bf16 %v2027, 1069105081
    %v2033 = vpow.bf16.pop %v2032
    %v2035 = vmul.bf16 %v2028, 1069105081
    %v2036 = vpow.bf16.pop %v2035
    %v2038 = vmul.bf16 %v2029, 1069105081
    %v2039 = vpow.bf16.pop %v2038
    %v2041 = vmul.bf16 %v2030, 1069105081
    %v2042 = vpow.bf16.pop %v2041
    %v2043 = vadd.bf16 %v2033, 1065369472
    %v2044 = vadd.bf16 %v2036, 1065369472
    %v2045 = vadd.bf16 %v2039, 1065369472
    %v2046 = vadd.bf16 %v2042, 1065369472
    %v2047 = vmul.bf16 %v2043, %v2043
    %v2048 = vmul.bf16 %v2044, %v2044
    %v2049 = vmul.bf16 %v2045, %v2045
    %v2050 = vmul.bf16 %v2046, %v2046
    %v2051 = vsub.bf16 %v2047, 1065369472
    %v2052 = vsub.bf16 %v2048, 1065369472
    %v2053 = vsub.bf16 %v2049, 1065369472
    %v2054 = vsub.bf16 %v2050, 1065369472
    %v2055 = vmul.bf16 %v2023, %v2051
    %v2056 = vmul.bf16 %v2024, %v2052
    %v2057 = vmul.bf16 %v2025, %v2053
    %v2058 = vmul.bf16 %v2026, %v2054
    %v2059 = vadd.bf16 %v2047, 1065369472
    %v2060 = vadd.bf16 %v2048, 1065369472
    %v2061 = vadd.bf16 %v2049, 1065369472
    %v2062 = vadd.bf16 %v2050, 1065369472
    %v2063 = vunpack.c.l.bf16 %v2059
    %v2064 = vunpack.c.l.bf16 %v2060
    %v2065 = vunpack.c.l.bf16 %v2061
    %v2066 = vunpack.c.l.bf16 %v2062
    %v2067 = vrcp.pop %v2063
    %v2068 = vrcp.pop %v2064
    %v2069 = vrcp.pop %v2065
    %v2070 = vrcp.pop %v2066
    %v2071 = vpack.c.bf16 %v2067, %v2067
    %v2072 = vpack.c.bf16 %v2068, %v2068
    %v2073 = vpack.c.bf16 %v2069, %v2069
    %v2074 = vpack.c.bf16 %v2070, %v2070
    %v2075 = vmul.bf16 %v2055, %v2071
    %v2076 = vmul.bf16 %v2056, %v2072
    %v2077 = vmul.bf16 %v2057, %v2073
    %v2078 = vmul.bf16 %v2058, %v2074
    %v2079 = vld [vmem:[#allocation7] sm:$0xff]
    %v2080 = vld [vmem:[#allocation7 + $0x8] sm:$0xff]
    %v2081 = vld [vmem:[#allocation7 + $0x10] sm:$0xff]
    %v2082 = vld [vmem:[#allocation7 + $0x18] sm:$0xff]
    %v2083 = vld [vmem:[#allocation7 + $0x20] sm:$0xff]
    %v2084 = vld [vmem:[#allocation7 + $0x28] sm:$0xff]
    %v2085 = vld [vmem:[#allocation7 + $0x30] sm:$0xff]
    %v2086 = vld [vmem:[#allocation7 + $0x38] sm:$0xff]
    %v2087 = vld [vmem:[#allocation7 + $0x40] sm:$0xff]
    %v2088 = vld [vmem:[#allocation7 + $0x48] sm:$0xff]
    %v2089 = vld [vmem:[#allocation7 + $0x50] sm:$0xff]
    %v2090 = vld [vmem:[#allocation7 + $0x58] sm:$0xff]
    %v2091 = vld [vmem:[#allocation7 + $0x60] sm:$0xff]
    %v2092 = vld [vmem:[#allocation7 + $0x68] sm:$0xff]
    %v2093 = vld [vmem:[#allocation7 + $0x70] sm:$0xff]
    %v2094 = vld [vmem:[#allocation7 + $0x78] sm:$0xff]
    %v2095 = vld [vmem:[#allocation7 + $0x80] sm:$0xff]
    %v2096 = vld [vmem:[#allocation7 + $0x88] sm:$0xff]
    %v2097 = vld [vmem:[#allocation7 + $0x90] sm:$0xff]
    %v2098 = vld [vmem:[#allocation7 + $0x98] sm:$0xff]
    %v2099 = vld [vmem:[#allocation7 + $0xa0] sm:$0xff]
    %v2100 = vld [vmem:[#allocation7 + $0xa8] sm:$0xff]
    %v2101 = vld [vmem:[#allocation7 + $0xb0] sm:$0xff]
    %v2102 = vld [vmem:[#allocation7 + $0xb8] sm:$0xff]
    %v2103 = vld [vmem:[#allocation7 + $0xc0] sm:$0xff]
    %v2104 = vld [vmem:[#allocation7 + $0xc8] sm:$0xff]
    %v2105 = vld [vmem:[#allocation7 + $0xd0] sm:$0xff]
    %v2106 = vld [vmem:[#allocation7 + $0xd8] sm:$0xff]
    %v2107 = vld [vmem:[#allocation7 + $0xe0] sm:$0xff]
    %v2108 = vld [vmem:[#allocation7 + $0xe8] sm:$0xff]
    %v2109 = vld [vmem:[#allocation7 + $0xf0] sm:$0xff]
    %v2110 = vld [vmem:[#allocation7 + $0xf8] sm:$0xff]
    %v2111 = vld [vmem:[#allocation7 + $0x100] sm:$0xff]
    %v2112 = vld [vmem:[#allocation7 + $0x108] sm:$0xff]
    %v2113 = vld [vmem:[#allocation7 + $0x110] sm:$0xff]
    %v2114 = vld [vmem:[#allocation7 + $0x118] sm:$0xff]
    %v2115 = vld [vmem:[#allocation7 + $0x120] sm:$0xff]
    %v2116 = vld [vmem:[#allocation7 + $0x128] sm:$0xff]
    %v2117 = vld [vmem:[#allocation7 + $0x130] sm:$0xff]
    %v2118 = vld [vmem:[#allocation7 + $0x138] sm:$0xff]
    %v2119 = vld [vmem:[#allocation7 + $0x140] sm:$0xff]
    %v2120 = vld [vmem:[#allocation7 + $0x148] sm:$0xff]
    %v2121 = vld [vmem:[#allocation7 + $0x150] sm:$0xff]
    %v2122 = vld [vmem:[#allocation7 + $0x158] sm:$0xff]
    %v2123 = vld [vmem:[#allocation7 + $0x160] sm:$0xff]
    %v2124 = vld [vmem:[#allocation7 + $0x168] sm:$0xff]
    %v2125 = vld [vmem:[#allocation7 + $0x170] sm:$0xff]
    %v2126 = vld [vmem:[#allocation7 + $0x178] sm:$0xff]
    %v2127 = vld [vmem:[#allocation7 + $0x180] sm:$0xff]
    %v2128 = vld [vmem:[#allocation7 + $0x188] sm:$0xff]
    %v2129 = vld [vmem:[#allocation7 + $0x190] sm:$0xff]
    %v2130 = vld [vmem:[#allocation7 + $0x198] sm:$0xff]
    %v2131 = vld [vmem:[#allocation7 + $0x1a0] sm:$0xff]
    %v2132 = vld [vmem:[#allocation7 + $0x1a8] sm:$0xff]
    %v2133 = vld [vmem:[#allocation7 + $0x1b0] sm:$0xff]
    %v2134 = vld [vmem:[#allocation7 + $0x1b8] sm:$0xff]
    %v2135 = vld [vmem:[#allocation7 + $0x1c0] sm:$0xff]
    %v2136 = vld [vmem:[#allocation7 + $0x1c8] sm:$0xff]
    %v2137 = vld [vmem:[#allocation7 + $0x1d0] sm:$0xff]
    %v2138 = vld [vmem:[#allocation7 + $0x1d8] sm:$0xff]
    %v2139 = vld [vmem:[#allocation7 + $0x1e0] sm:$0xff]
    %v2140 = vld [vmem:[#allocation7 + $0x1e8] sm:$0xff]
    %v2141 = vld [vmem:[#allocation7 + $0x1f0] sm:$0xff]
    %v2142 = vld [vmem:[#allocation7 + $0x1f8] sm:$0xff]
    %v2143 = vld [vmem:[%s4] sm:$0x3]
    %v2145 = vlaneseq
    %v2146 = vshrl.u32 %v2145, 7
    %v2147 = vsub.s32 0, %v2146
    %v2148 = vrot.slane %v2143, %v2147
    %v2149 = vlaneseq
    %v2150 = vshrl.u32 %v2149, 7
    %v2151 = vsub.s32 1, %v2150
    %v2152 = vrot.slane %v2143, %v2151
    %v2219 = vunpack.c.l.b16 %v2079
    %v2220 = vunpack.c.h.b16 %v2079
    %v2221 = vunpack.c.l.b16 %v2080
    %v2222 = vunpack.c.h.b16 %v2080
    %v2223 = vunpack.c.l.b16 %v2081
    %v2224 = vunpack.c.h.b16 %v2081
    %v2225 = vunpack.c.l.b16 %v2082
    %v2226 = vunpack.c.h.b16 %v2082
    %v2227 = vunpack.c.l.b16 %v2083
    %v2228 = vunpack.c.h.b16 %v2083
    %v2229 = vunpack.c.l.b16 %v2084
    %v2230 = vunpack.c.h.b16 %v2084
    %v2231 = vunpack.c.l.b16 %v2085
    %v2232 = vunpack.c.h.b16 %v2085
    %v2233 = vunpack.c.l.b16 %v2086
    %v2234 = vunpack.c.h.b16 %v2086
    %v2235 = vunpack.c.l.b16 %v2087
    %v2236 = vunpack.c.h.b16 %v2087
    %v2237 = vunpack.c.l.b16 %v2088
    %v2238 = vunpack.c.h.b16 %v2088
    %v2239 = vunpack.c.l.b16 %v2089
    %v2240 = vunpack.c.h.b16 %v2089
    %v2241 = vunpack.c.l.b16 %v2090
    %v2242 = vunpack.c.h.b16 %v2090
    %v2243 = vunpack.c.l.b16 %v2091
    %v2244 = vunpack.c.h.b16 %v2091
    %v2245 = vunpack.c.l.b16 %v2092
    %v2246 = vunpack.c.h.b16 %v2092
    %v2247 = vunpack.c.l.b16 %v2093
    %v2248 = vunpack.c.h.b16 %v2093
    %v2249 = vunpack.c.l.b16 %v2094
    %v2250 = vunpack.c.h.b16 %v2094
    %v2251 = vunpack.c.l.b16 %v2095
    %v2252 = vunpack.c.h.b16 %v2095
    %v2253 = vunpack.c.l.b16 %v2096
    %v2254 = vunpack.c.h.b16 %v2096
    %v2255 = vunpack.c.l.b16 %v2097
    %v2256 = vunpack.c.h.b16 %v2097
    %v2257 = vunpack.c.l.b16 %v2098
    %v2258 = vunpack.c.h.b16 %v2098
    %v2259 = vunpack.c.l.b16 %v2099
    %v2260 = vunpack.c.h.b16 %v2099
    %v2261 = vunpack.c.l.b16 %v2100
    %v2262 = vunpack.c.h.b16 %v2100
    %v2263 = vunpack.c.l.b16 %v2101
    %v2264 = vunpack.c.h.b16 %v2101
    %v2265 = vunpack.c.l.b16 %v2102
    %v2266 = vunpack.c.h.b16 %v2102
    %v2267 = vunpack.c.l.b16 %v2103
    %v2268 = vunpack.c.h.b16 %v2103
    %v2269 = vunpack.c.l.b16 %v2104
    %v2270 = vunpack.c.h.b16 %v2104
    %v2271 = vunpack.c.l.b16 %v2105
    %v2272 = vunpack.c.h.b16 %v2105
    %v2273 = vunpack.c.l.b16 %v2106
    %v2274 = vunpack.c.h.b16 %v2106
    %v2275 = vunpack.c.l.b16 %v2107
    %v2276 = vunpack.c.h.b16 %v2107
    %v2277 = vunpack.c.l.b16 %v2108
    %v2278 = vunpack.c.h.b16 %v2108
    %v2279 = vunpack.c.l.b16 %v2109
    %v2280 = vunpack.c.h.b16 %v2109
    %v2281 = vunpack.c.l.b16 %v2110
    %v2282 = vunpack.c.h.b16 %v2110
    %v2283 = vunpack.c.l.b16 %v2111
    %v2284 = vunpack.c.h.b16 %v2111
    %v2285 = vunpack.c.l.b16 %v2112
    %v2286 = vunpack.c.h.b16 %v2112
    %v2287 = vunpack.c.l.b16 %v2113
    %v2288 = vunpack.c.h.b16 %v2113
    %v2289 = vunpack.c.l.b16 %v2114
    %v2290 = vunpack.c.h.b16 %v2114
    %v2291 = vunpack.c.l.b16 %v2115
    %v2292 = vunpack.c.h.b16 %v2115
    %v2293 = vunpack.c.l.b16 %v2116
    %v2294 = vunpack.c.h.b16 %v2116
    %v2295 = vunpack.c.l.b16 %v2117
    %v2296 = vunpack.c.h.b16 %v2117
    %v2297 = vunpack.c.l.b16 %v2118
    %v2298 = vunpack.c.h.b16 %v2118
    %v2299 = vunpack.c.l.b16 %v2119
    %v2300 = vunpack.c.h.b16 %v2119
    %v2301 = vunpack.c.l.b16 %v2120
    %v2302 = vunpack.c.h.b16 %v2120
    %v2303 = vunpack.c.l.b16 %v2121
    %v2304 = vunpack.c.h.b16 %v2121
    %v2305 = vunpack.c.l.b16 %v2122
    %v2306 = vunpack.c.h.b16 %v2122
    %v2307 = vunpack.c.l.b16 %v2123
    %v2308 = vunpack.c.h.b16 %v2123
    %v2309 = vunpack.c.l.b16 %v2124
    %v2310 = vunpack.c.h.b16 %v2124
    %v2311 = vunpack.c.l.b16 %v2125
    %v2312 = vunpack.c.h.b16 %v2125
    %v2313 = vunpack.c.l.b16 %v2126
    %v2314 = vunpack.c.h.b16 %v2126
    %v2315 = vunpack.c.l.b16 %v2127
    %v2316 = vunpack.c.h.b16 %v2127
    %v2317 = vunpack.c.l.b16 %v2128
    %v2318 = vunpack.c.h.b16 %v2128
    %v2319 = vunpack.c.l.b16 %v2129
    %v2320 = vunpack.c.h.b16 %v2129
    %v2321 = vunpack.c.l.b16 %v2130
    %v2322 = vunpack.c.h.b16 %v2130
    %v2323 = vunpack.c.l.b16 %v2131
    %v2324 = vunpack.c.h.b16 %v2131
    %v2325 = vunpack.c.l.b16 %v2132
    %v2326 = vunpack.c.h.b16 %v2132
    %v2327 = vunpack.c.l.b16 %v2133
    %v2328 = vunpack.c.h.b16 %v2133
    %v2329 = vunpack.c.l.b16 %v2134
    %v2330 = vunpack.c.h.b16 %v2134
    %v2331 = vunpack.c.l.b16 %v2135
    %v2332 = vunpack.c.h.b16 %v2135
    %v2333 = vunpack.c.l.b16 %v2136
    %v2334 = vunpack.c.h.b16 %v2136
    %v2335 = vunpack.c.l.b16 %v2137
    %v2336 = vunpack.c.h.b16 %v2137
    %v2337 = vunpack.c.l.b16 %v2138
    %v2338 = vunpack.c.h.b16 %v2138
    %v2339 = vunpack.c.l.b16 %v2139
    %v2340 = vunpack.c.h.b16 %v2139
    %v2341 = vunpack.c.l.b16 %v2140
    %v2342 = vunpack.c.h.b16 %v2140
    %v2343 = vunpack.c.l.b16 %v2141
    %v2344 = vunpack.c.h.b16 %v2141
    %v2345 = vunpack.c.l.b16 %v2142
    %v2346 = vunpack.c.h.b16 %v2142
    %v2347 = vpack.c.b16 %v2221, %v2219
    %v2348 = vpack.c.b16 %v2222, %v2220
    %v2349 = vpack.c.b16 %v2225, %v2223
    %v2350 = vpack.c.b16 %v2226, %v2224
    %v2351 = vpack.c.b16 %v2229, %v2227
    %v2352 = vpack.c.b16 %v2230, %v2228
    %v2353 = vpack.c.b16 %v2233, %v2231
    %v2354 = vpack.c.b16 %v2234, %v2232
    %v2355 = vpack.c.b16 %v2237, %v2235
    %v2356 = vpack.c.b16 %v2238, %v2236
    %v2357 = vpack.c.b16 %v2241, %v2239
    %v2358 = vpack.c.b16 %v2242, %v2240
    %v2359 = vpack.c.b16 %v2245, %v2243
    %v2360 = vpack.c.b16 %v2246, %v2244
    %v2361 = vpack.c.b16 %v2249, %v2247
    %v2362 = vpack.c.b16 %v2250, %v2248
    %v2363 = vpack.c.b16 %v2253, %v2251
    %v2364 = vpack.c.b16 %v2254, %v2252
    %v2365 = vpack.c.b16 %v2257, %v2255
    %v2366 = vpack.c.b16 %v2258, %v2256
    %v2367 = vpack.c.b16 %v2261, %v2259
    %v2368 = vpack.c.b16 %v2262, %v2260
    %v2369 = vpack.c.b16 %v2265, %v2263
    %v2370 = vpack.c.b16 %v2266, %v2264
    %v2371 = vpack.c.b16 %v2269, %v2267
    %v2372 = vpack.c.b16 %v2270, %v2268
    %v2373 = vpack.c.b16 %v2273, %v2271
    %v2374 = vpack.c.b16 %v2274, %v2272
    %v2375 = vpack.c.b16 %v2277, %v2275
    %v2376 = vpack.c.b16 %v2278, %v2276
    %v2377 = vpack.c.b16 %v2281, %v2279
    %v2378 = vpack.c.b16 %v2282, %v2280
    %v2379 = vpack.c.b16 %v2285, %v2283
    %v2380 = vpack.c.b16 %v2286, %v2284
    %v2381 = vpack.c.b16 %v2289, %v2287
    %v2382 = vpack.c.b16 %v2290, %v2288
    %v2383 = vpack.c.b16 %v2293, %v2291
    %v2384 = vpack.c.b16 %v2294, %v2292
    %v2385 = vpack.c.b16 %v2297, %v2295
    %v2386 = vpack.c.b16 %v2298, %v2296
    %v2387 = vpack.c.b16 %v2301, %v2299
    %v2388 = vpack.c.b16 %v2302, %v2300
    %v2389 = vpack.c.b16 %v2305, %v2303
    %v2390 = vpack.c.b16 %v2306, %v2304
    %v2391 = vpack.c.b16 %v2309, %v2307
    %v2392 = vpack.c.b16 %v2310, %v2308
    %v2393 = vpack.c.b16 %v2313, %v2311
    %v2394 = vpack.c.b16 %v2314, %v2312
    %v2395 = vpack.c.b16 %v2317, %v2315
    %v2396 = vpack.c.b16 %v2318, %v2316
    %v2397 = vpack.c.b16 %v2321, %v2319
    %v2398 = vpack.c.b16 %v2322, %v2320
    %v2399 = vpack.c.b16 %v2325, %v2323
    %v2400 = vpack.c.b16 %v2326, %v2324
    %v2401 = vpack.c.b16 %v2329, %v2327
    %v2402 = vpack.c.b16 %v2330, %v2328
    %v2403 = vpack.c.b16 %v2333, %v2331
    %v2404 = vpack.c.b16 %v2334, %v2332
    %v2405 = vpack.c.b16 %v2337, %v2335
    %v2406 = vpack.c.b16 %v2338, %v2336
    %v2407 = vpack.c.b16 %v2341, %v2339
    %v2408 = vpack.c.b16 %v2342, %v2340
    %v2409 = vpack.c.b16 %v2345, %v2343
    %v2410 = vpack.c.b16 %v2346, %v2344
    %2475 = vmatprep.subr.bf16.mxu0 %v2348
    %2476 = vmatpush1.bf16.msra.mxu0 %v2347
    %2477 = vmatprep.subr.bf16.mxu0 %v2350
    %2478 = vmatpush1.bf16.msra.mxu0 %v2349
    %2479 = vmatprep.subr.bf16.mxu0 %v2352
    %2480 = vmatpush1.bf16.msra.mxu0 %v2351
    %2481 = vmatprep.subr.bf16.mxu0 %v2354
    %2482 = vmatpush1.bf16.msra.mxu0 %v2353
    %2483 = vmatprep.subr.bf16.mxu0 %v2356
    %2484 = vmatpush1.bf16.msra.mxu0 %v2355
    %2485 = vmatprep.subr.bf16.mxu0 %v2358
    %2486 = vmatpush1.bf16.msra.mxu0 %v2357
    %2487 = vmatprep.subr.bf16.mxu0 %v2360
    %2488 = vmatpush1.bf16.msra.mxu0 %v2359
    %2489 = vmatprep.subr.bf16.mxu0 %v2362
    %2490 = vmatpush1.bf16.msra.mxu0 %v2361
    %2491 = vmatprep.subr.bf16.mxu0 %v2364
    %2492 = vmatpush1.bf16.msra.mxu0 %v2363
    %2493 = vmatprep.subr.bf16.mxu0 %v2366
    %2494 = vmatpush1.bf16.msra.mxu0 %v2365
    %2495 = vmatprep.subr.bf16.mxu0 %v2368
    %2496 = vmatpush1.bf16.msra.mxu0 %v2367
    %2497 = vmatprep.subr.bf16.mxu0 %v2370
    %2498 = vmatpush1.bf16.msra.mxu0 %v2369
    %2499 = vmatprep.subr.bf16.mxu0 %v2372
    %2500 = vmatpush1.bf16.msra.mxu0 %v2371
    %2501 = vmatprep.subr.bf16.mxu0 %v2374
    %2502 = vmatpush1.bf16.msra.mxu0 %v2373
    %2503 = vmatprep.subr.bf16.mxu0 %v2376
    %2504 = vmatpush1.bf16.msra.mxu0 %v2375
    %2505 = vmatprep.subr.bf16.mxu0 %v2378
    %2506 = vmatpush1.bf16.msra.mxu0 %v2377
    %2507 = vmatprep.mubr.bf16.mxu0 %v2076
    %2508 = vmatmul.mubr.bf16.gmra.mrb[0].mxu0 %v2075
    %v2509 = vpop.f32.mrb[0].mxu0
    %v2510 = vadd.f32 %v2148, %v2509
    %v2511 = vpop.f32.mrb[0].mxu0
    %v2512 = vadd.f32 %v2152, %v2511
    %v2513 = vpop.f32.mrb[0].mxu0
    %v2514 = vpop.f32.mrb[0].mxu0
    %2515 = vdwg.mxu0
    %2516 = vmatprep.subr.bf16.mxu0 %v2380
    %2517 = vmatpush1.bf16.msra.mxu0 %v2379
    %2518 = vmatprep.subr.bf16.mxu0 %v2382
    %2519 = vmatpush1.bf16.msra.mxu0 %v2381
    %2520 = vmatprep.subr.bf16.mxu0 %v2384
    %2521 = vmatpush1.bf16.msra.mxu0 %v2383
    %2522 = vmatprep.subr.bf16.mxu0 %v2386
    %2523 = vmatpush1.bf16.msra.mxu0 %v2385
    %2524 = vmatprep.subr.bf16.mxu0 %v2388
    %2525 = vmatpush1.bf16.msra.mxu0 %v2387
    %2526 = vmatprep.subr.bf16.mxu0 %v2390
    %2527 = vmatpush1.bf16.msra.mxu0 %v2389
    %2528 = vmatprep.subr.bf16.mxu0 %v2392
    %2529 = vmatpush1.bf16.msra.mxu0 %v2391
    %2530 = vmatprep.subr.bf16.mxu0 %v2394
    %2531 = vmatpush1.bf16.msra.mxu0 %v2393
    %2532 = vmatprep.subr.bf16.mxu0 %v2396
    %2533 = vmatpush1.bf16.msra.mxu0 %v2395
    %2534 = vmatprep.subr.bf16.mxu0 %v2398
    %2535 = vmatpush1.bf16.msra.mxu0 %v2397
    %2536 = vmatprep.subr.bf16.mxu0 %v2400
    %2537 = vmatpush1.bf16.msra.mxu0 %v2399
    %2538 = vmatprep.subr.bf16.mxu0 %v2402
    %2539 = vmatpush1.bf16.msra.mxu0 %v2401
    %2540 = vmatprep.subr.bf16.mxu0 %v2404
    %2541 = vmatpush1.bf16.msra.mxu0 %v2403
    %2542 = vmatprep.subr.bf16.mxu0 %v2406
    %2543 = vmatpush1.bf16.msra.mxu0 %v2405
    %2544 = vmatprep.subr.bf16.mxu0 %v2408
    %2545 = vmatpush1.bf16.msra.mxu0 %v2407
    %2546 = vmatprep.subr.bf16.mxu0 %v2410
    %2547 = vmatpush1.bf16.msra.mxu0 %v2409
    %2548 = vmatprep.mubr.bf16.mxu0 %v2078
    %2549 = vmatmul.mubr.bf16.gmra.mrb[0].mxu0 %v2077
    %v2550 = vpop.f32.mrb[0].mxu0
    %v2551 = vadd.f32 %v2510, %v2550
    %v2552 = vpop.f32.mrb[0].mxu0
    %v2553 = vadd.f32 %v2512, %v2552
    %v2554 = vpop.f32.mrb[0].mxu0
    %v2555 = vpop.f32.mrb[0].mxu0
    %2556 = vdwg.mxu0
    %v2557 = vpack.c.bf16 %v2551, %v2551
    %v2558 = vpack.c.bf16 %v2553, %v2553
    %v2559 = vmin.bf16 %v2557, 1101021600
    %v2560 = vmin.bf16 %v2558, 1101021600
    %v2562 = vmul.bf16 %v2559, 1069105081
    %v2563 = vpow.bf16.pop %v2562
    %v2565 = vmul.bf16 %v2560, 1069105081
    %v2566 = vpow.bf16.pop %v2565
    %v2567 = vadd.bf16 %v2563, 1065369472
    %v2568 = vadd.bf16 %v2566, 1065369472
    %v2569 = vmul.bf16 %v2567, %v2567
    %v2570 = vmul.bf16 %v2568, %v2568
    %v2571 = vsub.bf16 %v2569, 1065369472
    %v2572 = vsub.bf16 %v2570, 1065369472
    %v2573 = vmul.bf16 %v2557, %v2571
    %v2574 = vmul.bf16 %v2558, %v2572
    %v2575 = vadd.bf16 %v2569, 1065369472
    %v2576 = vadd.bf16 %v2570, 1065369472
    %v2577 = vunpack.c.l.bf16 %v2575
    %v2578 = vunpack.c.l.bf16 %v2576
    %v2579 = vrcp.pop %v2577
    %v2580 = vrcp.pop %v2578
    %v2581 = vpack.c.bf16 %v2579, %v2579
    %v2582 = vpack.c.bf16 %v2580, %v2580
    %v2583 = vmul.bf16 %v2573, %v2581
    %v2584 = vmul.bf16 %v2574, %v2582
    %v2585 = vld [vmem:[#allocation8] sm:$0xf]
    %v2586 = vld [vmem:[#allocation8 + $0x4] sm:$0xf]
    %v2587 = vld [vmem:[#allocation8 + $0x8] sm:$0xf]
    %v2588 = vld [vmem:[#allocation8 + $0xc] sm:$0xf]
    %v2589 = vld [vmem:[#allocation8 + $0x10] sm:$0xf]
    %v2590 = vld [vmem:[#allocation8 + $0x14] sm:$0xf]
    %v2591 = vld [vmem:[#allocation8 + $0x18] sm:$0xf]
    %v2592 = vld [vmem:[#allocation8 + $0x1c] sm:$0xf]
    %v2593 = vld [vmem:[#allocation8 + $0x20] sm:$0xf]
    %v2594 = vld [vmem:[#allocation8 + $0x24] sm:$0xf]
    %v2595 = vld [vmem:[#allocation8 + $0x28] sm:$0xf]
    %v2596 = vld [vmem:[#allocation8 + $0x2c] sm:$0xf]
    %v2597 = vld [vmem:[#allocation8 + $0x30] sm:$0xf]
    %v2598 = vld [vmem:[#allocation8 + $0x34] sm:$0xf]
    %v2599 = vld [vmem:[#allocation8 + $0x38] sm:$0xf]
    %v2600 = vld [vmem:[#allocation8 + $0x3c] sm:$0xf]
    %v2601 = vld [vmem:[#allocation8 + $0x40] sm:$0xf]
    %v2602 = vld [vmem:[#allocation8 + $0x44] sm:$0xf]
    %v2603 = vld [vmem:[#allocation8 + $0x48] sm:$0xf]
    %v2604 = vld [vmem:[#allocation8 + $0x4c] sm:$0xf]
    %v2605 = vld [vmem:[#allocation8 + $0x50] sm:$0xf]
    %v2606 = vld [vmem:[#allocation8 + $0x54] sm:$0xf]
    %v2607 = vld [vmem:[#allocation8 + $0x58] sm:$0xf]
    %v2608 = vld [vmem:[#allocation8 + $0x5c] sm:$0xf]
    %v2609 = vld [vmem:[#allocation8 + $0x60] sm:$0xf]
    %v2610 = vld [vmem:[#allocation8 + $0x64] sm:$0xf]
    %v2611 = vld [vmem:[#allocation8 + $0x68] sm:$0xf]
    %v2612 = vld [vmem:[#allocation8 + $0x6c] sm:$0xf]
    %v2613 = vld [vmem:[#allocation8 + $0x70] sm:$0xf]
    %v2614 = vld [vmem:[#allocation8 + $0x74] sm:$0xf]
    %v2615 = vld [vmem:[#allocation8 + $0x78] sm:$0xf]
    %v2616 = vld [vmem:[#allocation8 + $0x7c] sm:$0xf]
    %v2617 = vld [vmem:[%s6] sm:$0x1]
    %v2619 = vlaneseq
    %v2620 = vshrl.u32 %v2619, 7
    %v2621 = vsub.s32 0, %v2620
    %v2622 = vrot.slane %v2617, %v2621
    %v2656 = vunpack.c.l.b16 %v2585
    %v2657 = vunpack.c.l.b16 %v2586
    %v2658 = vunpack.c.l.b16 %v2587
    %v2659 = vunpack.c.l.b16 %v2588
    %v2660 = vunpack.c.l.b16 %v2589
    %v2661 = vunpack.c.l.b16 %v2590
    %v2662 = vunpack.c.l.b16 %v2591
    %v2663 = vunpack.c.l.b16 %v2592
    %v2664 = vunpack.c.l.b16 %v2593
    %v2665 = vunpack.c.l.b16 %v2594
    %v2666 = vunpack.c.l.b16 %v2595
    %v2667 = vunpack.c.l.b16 %v2596
    %v2668 = vunpack.c.l.b16 %v2597
    %v2669 = vunpack.c.l.b16 %v2598
    %v2670 = vunpack.c.l.b16 %v2599
    %v2671 = vunpack.c.l.b16 %v2600
    %v2672 = vunpack.c.l.b16 %v2601
    %v2673 = vunpack.c.l.b16 %v2602
    %v2674 = vunpack.c.l.b16 %v2603
    %v2675 = vunpack.c.l.b16 %v2604
    %v2676 = vunpack.c.l.b16 %v2605
    %v2677 = vunpack.c.l.b16 %v2606
    %v2678 = vunpack.c.l.b16 %v2607
    %v2679 = vunpack.c.l.b16 %v2608
    %v2680 = vunpack.c.l.b16 %v2609
    %v2681 = vunpack.c.l.b16 %v2610
    %v2682 = vunpack.c.l.b16 %v2611
    %v2683 = vunpack.c.l.b16 %v2612
    %v2684 = vunpack.c.l.b16 %v2613
    %v2685 = vunpack.c.l.b16 %v2614
    %v2686 = vunpack.c.l.b16 %v2615
    %v2687 = vunpack.c.l.b16 %v2616
    %v2688 = vpack.c.b16 %v2657, %v2656
    %v2689 = vpack.c.b16 %v2659, %v2658
    %v2690 = vpack.c.b16 %v2661, %v2660
    %v2691 = vpack.c.b16 %v2663, %v2662
    %v2692 = vpack.c.b16 %v2665, %v2664
    %v2693 = vpack.c.b16 %v2667, %v2666
    %v2694 = vpack.c.b16 %v2669, %v2668
    %v2695 = vpack.c.b16 %v2671, %v2670
    %v2696 = vpack.c.b16 %v2673, %v2672
    %v2697 = vpack.c.b16 %v2675, %v2674
    %v2698 = vpack.c.b16 %v2677, %v2676
    %v2699 = vpack.c.b16 %v2679, %v2678
    %v2700 = vpack.c.b16 %v2681, %v2680
    %v2701 = vpack.c.b16 %v2683, %v2682
    %v2702 = vpack.c.b16 %v2685, %v2684
    %v2703 = vpack.c.b16 %v2687, %v2686
    %2720 = vmatprep.subr.bf16.mxu0 0
    %2721 = vmatpush1.bf16.msra.mxu0 %v2688
    %2722 = vmatprep.subr.bf16.mxu0 0
    %2723 = vmatpush1.bf16.msra.mxu0 %v2689
    %2724 = vmatprep.subr.bf16.mxu0 0
    %2725 = vmatpush1.bf16.msra.mxu0 %v2690
    %2726 = vmatprep.subr.bf16.mxu0 0
    %2727 = vmatpush1.bf16.msra.mxu0 %v2691
    %2728 = vmatprep.subr.bf16.mxu0 0
    %2729 = vmatpush1.bf16.msra.mxu0 %v2692
    %2730 = vmatprep.subr.bf16.mxu0 0
    %2731 = vmatpush1.bf16.msra.mxu0 %v2693
    %2732 = vmatprep.subr.bf16.mxu0 0
    %2733 = vmatpush1.bf16.msra.mxu0 %v2694
    %2734 = vmatprep.subr.bf16.mxu0 0
    %2735 = vmatpush1.bf16.msra.mxu0 %v2695
    %2736 = vmatprep.subr.bf16.mxu0 0
    %2737 = vmatpush1.bf16.msra.mxu0 %v2696
    %2738 = vmatprep.subr.bf16.mxu0 0
    %2739 = vmatpush1.bf16.msra.mxu0 %v2697
    %2740 = vmatprep.subr.bf16.mxu0 0
    %2741 = vmatpush1.bf16.msra.mxu0 %v2698
    %2742 = vmatprep.subr.bf16.mxu0 0
    %2743 = vmatpush1.bf16.msra.mxu0 %v2699
    %2744 = vmatprep.subr.bf16.mxu0 0
    %2745 = vmatpush1.bf16.msra.mxu0 %v2700
    %2746 = vmatprep.subr.bf16.mxu0 0
    %2747 = vmatpush1.bf16.msra.mxu0 %v2701
    %2748 = vmatprep.subr.bf16.mxu0 0
    %2749 = vmatpush1.bf16.msra.mxu0 %v2702
    %2750 = vmatprep.subr.bf16.mxu0 0
    %2751 = vmatpush1.bf16.msra.mxu0 %v2703
    %2752 = vmatprep.mubr.bf16.mxu0 %v2584
    %2753 = vmatmul.mubr.bf16.gmra.mrb[0].mxu0 %v2583
    %v2754 = vpop.f32.mrb[0].mxu0
    %v2755 = vadd.f32 %v2622, %v2754
    %v2756 = vpop.f32.mrb[0].mxu0
    %v2757 = vpop.f32.mrb[0].mxu0
    %v2758 = vpop.f32.mrb[0].mxu0
    %2759 = vdwg.mxu0
    %2760 = vst [vmem:[#allocation10] sm:$0x3] %v2755
    // Predicated region
    $region46: #{tpu_custom_call.1} parent=1 // pred_check
      _
    $region47: #{tpu_custom_call.1} parent=1 // pred_check_branch
      %2762 = sbr.rel (0) target = $region49
    $region48: #{tpu_custom_call.1} parent=1 // pred_region
      %s2764 = ssub.s32 32, 32
      %2765 = vsyncadd [#allocation4], %s2764
      %s2767 = sshll.u32 [#allocation10], 4
      %s2768 = int_to_ptr.vmem [resolvable:$true] %s2767
      %2770 = dma.vmem_to_hbm [thread:$0]  %s2768, 32, %s7, [#allocation4]
    $region49: #{tpu_custom_call.1} parent=1 // pred_fallthru
      _
    // Predicated region
    $region50: #{tpu_custom_call.1} parent=1 // pred_check
      _
    $region51: #{tpu_custom_call.1} parent=1 // pred_check_branch
      %2772 = sbr.rel (0) target = $region53
    $region52: #{tpu_custom_call.1} parent=1 // pred_region
      %2773 = dma.done [#allocation4], 32
    $region53: #{tpu_custom_call.1} parent=1 // pred_fallthru
      _
    %2774 = vsyncpa [#allocation3], 1
    %2775 = vsyncpa [#allocation6], 1
    %2776 = vsyncpa [#allocation9], 1
    %2777 = vsyncpa [#allocation4], 1

</llo_original>
